<compile_context>
chip_gen: v6e
topology: v6e:2x2x1
jax: 0.10.0
libtpu: 0.0.40
codegen_flags: <defaults>
</compile_context>

<pallas_src>
import jax
import jax.numpy as jnp
from jax.experimental import pallas as pl
from jax.experimental.pallas import tpu as pltpu


# ----------------------------- helpers (used both in kernel and reference) ---

def _layernorm(x, gamma, beta, eps=1e-5):
    mean = jnp.mean(x, axis=-1, keepdims=True)
    var = jnp.mean(jnp.square(x - mean), axis=-1, keepdims=True)
    return (x - mean) * jax.lax.rsqrt(var + eps) * gamma + beta


def _gelu(x):
    return jax.nn.gelu(x, approximate=True)


# ----------------------------------------------------------------- kernel ----

def wavemixer_kernel(xp_ref,                       # (BT, N, PC)
                     we_ref, be_ref,               # (PC, D), (1, D)
                     ln1g_ref, ln1b_ref,           # (Lm, 1, D)
                     tw1t_ref, tb1c_ref,           # (Lm, N, N), (Lm, N, 1)
                     tw2t_ref, tb2c_ref,           # (Lm, N, N), (Lm, N, 1)
                     ln2g_ref, ln2b_ref,           # (Lm, 1, D)
                     cw1_ref, cb1_ref,             # (Lm, D, D), (Lm, 1, D)
                     cw2_ref, cb2_ref,             # (Lm, D, D), (Lm, 1, D)
                     lnfg_ref, lnfb_ref,           # (1, D)
                     wh_ref, bh_ref,               # (D, Op), (1, Op)
                     out_ref):                     # (BT, 1, Op)
    BT, N, PC = xp_ref.shape
    D = we_ref.shape[1]
    Lm = tw1t_ref.shape[0]

    # Patch embedding: one flat (BT*N, PC) @ (PC, D) matmul for the whole tile.
    xp = xp_ref[...].reshape(BT * N, PC)
    h = jnp.dot(xp, we_ref[...], preferred_element_type=jnp.float32) + be_ref[...]

    # Static unroll; Lm is small.  (Switch to lax.fori_loop if Lm grows > ~4.)
    for i in range(Lm):
        # --- token-mixing MLP: mixes the N patch axis; D stays on lanes. ---
        y = _layernorm(h, ln1g_ref[i], ln1b_ref[i]).reshape(BT, N, D)
        w1 = jnp.broadcast_to(tw1t_ref[i], (BT, N, N))
        w2 = jnp.broadcast_to(tw2t_ref[i], (BT, N, N))
        u = _gelu(jnp.einsum('bnm,bmd->bnd', w1, y,
                             preferred_element_type=jnp.float32)
                  + tb1c_ref[i][None])
        t = jnp.einsum('bnm,bmd->bnd', w2, u,
                       preferred_element_type=jnp.float32) + tb2c_ref[i][None]
        h = h + t.reshape(BT * N, D)

        # --- channel-mixing MLP: mixes the D feature axis, flat over rows. ---
        y = _layernorm(h, ln2g_ref[i], ln2b_ref[i])
        y = _gelu(jnp.dot(y, cw1_ref[i],
                          preferred_element_type=jnp.float32) + cb1_ref[i])
        y = jnp.dot(y, cw2_ref[i],
                    preferred_element_type=jnp.float32) + cb2_ref[i]
        h = h + y

    # final LayerNorm, mean-pool over patches, batched classification head
    h = _layernorm(h, lnfg_ref[...], lnfb_ref[...])                  # (BT*N, D)
    pooled = jnp.mean(h.reshape(BT, N, D), axis=1)                   # (BT, D)
    out = jnp.dot(pooled, wh_ref[...],
                  preferred_element_type=jnp.float32) + bh_ref[...]  # (BT, Op)
    out_ref[...] = out[:, None, :]


# ---------------------------------------------------------------- wrapper ----

def wave_mixer_forward(x, p, patch_size, batch_tile=None):
    B, C, L = x.shape
    P = patch_size
    N = L // P
    PC = P * C
    D = p["we"].shape[1]
    O = p["wh"].shape[1]
    Lm = p["tw1"].shape[0]

    # glue: einops Rearrange 'b c (l p) -> b l (p c)'
    xp = x.reshape(B, C, N, P).transpose(0, 2, 3, 1).reshape(B, N, PC)
    xp = xp.astype(jnp.float32)

    # batch tiling: aim for >= 256 rows per matmul, amortize grid overhead
    if batch_tile is None:
        tile = max(1, 256 // N)
        if tile >= 8:
            tile -= tile % 8            # keep sublane-friendly when grid > 1
        batch_tile = min(B, tile)
    BT = batch_tile
    B_pad = pl.cdiv(B, BT) * BT
    if B_pad != B:
        xp = jnp.pad(xp, ((0, B_pad - B), (0, 0), (0, 0)))

    # pre-transpose token-mix weights / biases -> no activation transposes
    tw1t = jnp.swapaxes(p["tw1"], -1, -2)
    tw2t = jnp.swapaxes(p["tw2"], -1, -2)
    tb1c = jnp.swapaxes(p["tb1"], -1, -2)          # (Lm, N, 1)
    tb2c = jnp.swapaxes(p["tb2"], -1, -2)          # (Lm, N, 1)

    # pad classification head to lane-dense output width
    O_pad = pl.cdiv(O, 128) * 128
    wh = jnp.pad(p["wh"], ((0, 0), (0, O_pad - O)))
    bh = jnp.pad(p["bh"], ((0, 0), (0, O_pad - O)))

    def const_spec(shape):
        n = len(shape)
        # constant block index across the grid -> Pallas skips re-DMA per step
        return pl.BlockSpec(shape, lambda b, n=n: (0,) * n)

    in_specs = [
        pl.BlockSpec((BT, N, PC), lambda b: (b, 0, 0)),  # xp (per-tile block)
        const_spec((PC, D)), const_spec((1, D)),         # patch embed
        const_spec((Lm, 1, D)), const_spec((Lm, 1, D)),  # ln1 gamma/beta
        const_spec((Lm, N, N)), const_spec((Lm, N, 1)),  # token w1^T / b1 col
        const_spec((Lm, N, N)), const_spec((Lm, N, 1)),  # token w2^T / b2 col
        const_spec((Lm, 1, D)), const_spec((Lm, 1, D)),  # ln2 gamma/beta
        const_spec((Lm, D, D)), const_spec((Lm, 1, D)),  # channel w1/b1
        const_spec((Lm, D, D)), const_spec((Lm, 1, D)),  # channel w2/b2
        const_spec((1, D)), const_spec((1, D)),          # final layernorm
        const_spec((D, O_pad)), const_spec((1, O_pad)),  # head (padded)
    ]

    flops = B_pad * (2 * N * PC * D
                     + Lm * (4 * N * N * D + 4 * N * D * D)
                     + 2 * D * O_pad)
    transcendentals = B_pad * Lm * 2 * N * D
    param_bytes = 4 * sum(int(a.size) for a in (
        p["we"], p["be"], p["ln1g"], p["ln1b"], tw1t, tb1c, tw2t, tb2c,
        p["ln2g"], p["ln2b"], p["cw1"], p["cb1"], p["cw2"], p["cb2"],
        p["lnfg"], p["lnfb"], wh, bh))
    bytes_accessed = 4 * (B_pad * N * PC + B_pad * O_pad) + param_bytes

    out = pl.pallas_call(
        wavemixer_kernel,
        out_shape=jax.ShapeDtypeStruct((B_pad, 1, O_pad), jnp.float32),
        grid=(B_pad // BT,),
        in_specs=in_specs,
        out_specs=pl.BlockSpec((BT, 1, O_pad), lambda b: (b, 0, 0)),
        compiler_params=pltpu.CompilerParams(dimension_semantics=("parallel",)),
        cost_estimate=pl.CostEstimate(flops=flops,
                                      transcendentals=transcendentals,
                                      bytes_accessed=bytes_accessed),
    )(xp,
      p["we"], p["be"],
      p["ln1g"], p["ln1b"], tw1t, tb1c, tw2t, tb2c,
      p["ln2g"], p["ln2b"], p["cw1"], p["cb1"], p["cw2"], p["cb2"],
      p["lnfg"], p["lnfb"], wh, bh)

    return out.reshape(B_pad, O_pad)[:B, :O]


# ------------------------------------------------------- pure-JAX reference --

def reference_forward(x, p, patch_size):
    B, C, L = x.shape
    P = patch_size
    N = L // P
    xp = x.reshape(B, C, N, P).transpose(0, 2, 3, 1).reshape(B, N, P * C)
    h = xp @ p["we"] + p["be"]
    for i in range(p["tw1"].shape[0]):
        y = _layernorm(h, p["ln1g"][i], p["ln1b"][i])
        yt = jnp.swapaxes(y, -1, -2)
        yt = _gelu(yt @ p["tw1"][i] + p["tb1"][i])
        yt = yt @ p["tw2"][i] + p["tb2"][i]
        h = h + jnp.swapaxes(yt, -1, -2)
        y = _layernorm(h, p["ln2g"][i], p["ln2b"][i])
        y = _gelu(y @ p["cw1"][i] + p["cb1"][i])
        y = y @ p["cw2"][i] + p["cb2"][i]
        h = h + y
    h = _layernorm(h, p["lnfg"], p["lnfb"])
    pooled = h.mean(axis=1)
    return pooled @ p["wh"] + p["bh"]


# ---------------------------------------------------------- param building ---

def init_params(key, channels, patch_size, num_patches, mixer_dim, out_features,
                num_mixers):
    PC = patch_size * channels
    N, D, O, Lm = num_patches, mixer_dim, out_features, num_mixers
    keys = iter(jax.random.split(key, 32))

    def dense(k, shape, fan_in):
        return jax.random.normal(k, shape, jnp.float32) / jnp.sqrt(fan_in)

    def bias(k, shape):
        return 0.01 * jax.random.normal(k, shape, jnp.float32)

    def ln_gamma(k, shape):
        return 1.0 + 0.1 * jax.random.normal(k, shape, jnp.float32)

    return {
        "we":   dense(next(keys), (PC, D), PC),
        "be":   bias(next(keys), (1, D)),
        "ln1g": ln_gamma(next(keys), (Lm, 1, D)),
        "ln1b": bias(next(keys), (Lm, 1, D)),
        "tw1":  dense(next(keys), (Lm, N, N), N),
        "tb1":  bias(next(keys), (Lm, 1, N)),
        "tw2":  dense(next(keys), (Lm, N, N), N),
        "tb2":  bias(next(keys), (Lm, 1, N)),
        "ln2g": ln_gamma(next(keys), (Lm, 1, D)),
        "ln2b": bias(next(keys), (Lm, 1, D)),
        "cw1":  dense(next(keys), (Lm, D, D), D),
        "cb1":  bias(next(keys), (Lm, 1, D)),
        "cw2":  dense(next(keys), (Lm, D, D), D),
        "cb2":  bias(next(keys), (Lm, 1, D)),
        "lnfg": ln_gamma(next(keys), (1, D)),
        "lnfb": bias(next(keys), (1, D)),
        "wh":   dense(next(keys), (D, O), D),
        "bh":   bias(next(keys), (1, O)),
    }


# ------------------------------------------------------------------- main ----

if __name__ == "__main__":
    # WaveMixer(in_features=128, out_features=10, channels=2, patch_size=16,
    #           mixer_dim=32, num_mixers=2)
    batch = 2
    channels = 2
    in_features = 128
    patch_size = 16
    mixer_dim = 32
    num_mixers = 2
    out_features = 10
    num_patches = in_features // patch_size

    key = jax.random.PRNGKey(0)
    k_x, k_p = jax.random.split(key)
    x = jax.random.normal(k_x, (batch, channels, in_features), jnp.float32)
    params = init_params(k_p, channels, patch_size, num_patches, mixer_dim,
                         out_features, num_mixers)

    y = wave_mixer_forward(x, params, patch_size)
    y = jax.block_until_ready(y)

    y_ref = reference_forward(x, params, patch_size)
    assert y.shape == (batch, out_features)
    assert jnp.allclose(y, y_ref, atol=1e-4, rtol=1e-4), (
        f"mismatch: max abs diff {jnp.max(jnp.abs(y - y_ref))}")

    print("KERNEL_OK")
</pallas_src>

<mosaic_0001>
module attributes {stable_mosaic.version = 11 : i64} {
  func.func @wavemixer_kernel(%arg0: i32, %arg1: memref<2x8x32xf32, #tpu.memory_space<vmem>>, %arg2: memref<32x32xf32, #tpu.memory_space<vmem>>, %arg3: memref<1x32xf32, #tpu.memory_space<vmem>>, %arg4: memref<2x1x32xf32, #tpu.memory_space<vmem>>, %arg5: memref<2x1x32xf32, #tpu.memory_space<vmem>>, %arg6: memref<2x8x8xf32, #tpu.memory_space<vmem>>, %arg7: memref<2x8x1xf32, #tpu.memory_space<vmem>>, %arg8: memref<2x8x8xf32, #tpu.memory_space<vmem>>, %arg9: memref<2x8x1xf32, #tpu.memory_space<vmem>>, %arg10: memref<2x1x32xf32, #tpu.memory_space<vmem>>, %arg11: memref<2x1x32xf32, #tpu.memory_space<vmem>>, %arg12: memref<2x32x32xf32, #tpu.memory_space<vmem>>, %arg13: memref<2x1x32xf32, #tpu.memory_space<vmem>>, %arg14: memref<2x32x32xf32, #tpu.memory_space<vmem>>, %arg15: memref<2x1x32xf32, #tpu.memory_space<vmem>>, %arg16: memref<1x32xf32, #tpu.memory_space<vmem>>, %arg17: memref<1x32xf32, #tpu.memory_space<vmem>>, %arg18: memref<32x128xf32, #tpu.memory_space<vmem>>, %arg19: memref<1x128xf32, #tpu.memory_space<vmem>>, %arg20: memref<2x1x128xf32, #tpu.memory_space<vmem>>) attributes {dimension_semantics = [#tpu.dimension_semantics<parallel>], iteration_bounds = array<i64: 1>, scalar_prefetch = 0 : i64, scratch_operands = 0 : i64, tpu.core_type = #tpu.core_type<tc>, window_params = [{transform_indices = @transform_0, window_bounds = array<i64: 2, 8, 32>}, {pipeline_mode = #tpu.pipeline_mode<synchronous>, transform_indices = @transform_1, window_bounds = array<i64: 32, 32>}, {pipeline_mode = #tpu.pipeline_mode<synchronous>, transform_indices = @transform_2, window_bounds = array<i64: 1, 32>}, {pipeline_mode = #tpu.pipeline_mode<synchronous>, transform_indices = @transform_3, window_bounds = array<i64: 2, 1, 32>}, {pipeline_mode = #tpu.pipeline_mode<synchronous>, transform_indices = @transform_4, window_bounds = array<i64: 2, 1, 32>}, {pipeline_mode = #tpu.pipeline_mode<synchronous>, transform_indices = @transform_5, window_bounds = array<i64: 2, 8, 8>}, {pipeline_mode = #tpu.pipeline_mode<synchronous>, transform_indices = @transform_6, window_bounds = array<i64: 2, 8, 1>}, {pipeline_mode = #tpu.pipeline_mode<synchronous>, transform_indices = @transform_7, window_bounds = array<i64: 2, 8, 8>}, {pipeline_mode = #tpu.pipeline_mode<synchronous>, transform_indices = @transform_8, window_bounds = array<i64: 2, 8, 1>}, {pipeline_mode = #tpu.pipeline_mode<synchronous>, transform_indices = @transform_9, window_bounds = array<i64: 2, 1, 32>}, {pipeline_mode = #tpu.pipeline_mode<synchronous>, transform_indices = @transform_10, window_bounds = array<i64: 2, 1, 32>}, {pipeline_mode = #tpu.pipeline_mode<synchronous>, transform_indices = @transform_11, window_bounds = array<i64: 2, 32, 32>}, {pipeline_mode = #tpu.pipeline_mode<synchronous>, transform_indices = @transform_12, window_bounds = array<i64: 2, 1, 32>}, {pipeline_mode = #tpu.pipeline_mode<synchronous>, transform_indices = @transform_13, window_bounds = array<i64: 2, 32, 32>}, {pipeline_mode = #tpu.pipeline_mode<synchronous>, transform_indices = @transform_14, window_bounds = array<i64: 2, 1, 32>}, {pipeline_mode = #tpu.pipeline_mode<synchronous>, transform_indices = @transform_15, window_bounds = array<i64: 1, 32>}, {pipeline_mode = #tpu.pipeline_mode<synchronous>, transform_indices = @transform_16, window_bounds = array<i64: 1, 32>}, {pipeline_mode = #tpu.pipeline_mode<synchronous>, transform_indices = @transform_17, window_bounds = array<i64: 32, 128>}, {pipeline_mode = #tpu.pipeline_mode<synchronous>, transform_indices = @transform_18, window_bounds = array<i64: 1, 128>}, {transform_indices = @transform_19, window_bounds = array<i64: 2, 1, 128>}]} {
    %c0 = arith.constant 0 : index
    %c0_0 = arith.constant 0 : index
    %c0_1 = arith.constant 0 : index
    %0 = vector.load %arg1[%c0, %c0_0, %c0_1] : memref<2x8x32xf32, #tpu.memory_space<vmem>>, vector<2x8x32xf32>
    %1 = vector.shape_cast %0 : vector<2x8x32xf32> to vector<16x32xf32>
    %c0_2 = arith.constant 0 : index
    %c0_3 = arith.constant 0 : index
    %2 = vector.load %arg2[%c0_2, %c0_3] : memref<32x32xf32, #tpu.memory_space<vmem>>, vector<32x32xf32>
    %cst = arith.constant dense<0.000000e+00> : vector<16x32xf32>
    %3 = tpu.matmul %1, %2, %cst {dimension_numbers = #tpu.dot_dimension_numbers<[1], [0], [0], [1], [0, 0, 1, 1], [], []>} : vector<16x32xf32>, vector<32x32xf32>, vector<16x32xf32> -> vector<16x32xf32>
    %c0_4 = arith.constant 0 : index
    %c0_5 = arith.constant 0 : index
    %4 = vector.load %arg3[%c0_4, %c0_5] : memref<1x32xf32, #tpu.memory_space<vmem>>, vector<1x32xf32>
    %5 = vector.broadcast %4 : vector<1x32xf32> to vector<16x32xf32>
    %6 = arith.addf %3, %5 : vector<16x32xf32>
    %c0_6 = arith.constant 0 : index
    %c0_7 = arith.constant 0 : index
    %c0_8 = arith.constant 0 : index
    %7 = vector.load %arg4[%c0_6, %c0_7, %c0_8] : memref<2x1x32xf32, #tpu.memory_space<vmem>>, vector<1x1x32xf32>
    %8 = vector.shape_cast %7 : vector<1x1x32xf32> to vector<1x32xf32>
    %c0_9 = arith.constant 0 : index
    %c0_10 = arith.constant 0 : index
    %c0_11 = arith.constant 0 : index
    %9 = vector.load %arg5[%c0_9, %c0_10, %c0_11] : memref<2x1x32xf32, #tpu.memory_space<vmem>>, vector<1x1x32xf32>
    %10 = vector.shape_cast %9 : vector<1x1x32xf32> to vector<1x32xf32>
    %cst_12 = arith.constant dense<0.000000e+00> : vector<16xf32>
    %11 = vector.multi_reduction <add>, %6, %cst_12 [1] : vector<16x32xf32> to vector<16xf32>
    %12 = vector.shape_cast %11 : vector<16xf32> to vector<16x1xf32>
    %cst_13 = arith.constant 3.200000e+01 : f32
    %13 = vector.broadcast %cst_13 : f32 to vector<16x1xf32>
    %14 = arith.divf %12, %13 : vector<16x1xf32>
    %15 = vector.broadcast %14 : vector<16x1xf32> to vector<16x32xf32>
    %16 = arith.subf %6, %15 : vector<16x32xf32>
    %17 = arith.mulf %16, %16 : vector<16x32xf32>
    %cst_14 = arith.constant dense<0.000000e+00> : vector<16xf32>
    %18 = vector.multi_reduction <add>, %17, %cst_14 [1] : vector<16x32xf32> to vector<16xf32>
    %19 = vector.shape_cast %18 : vector<16xf32> to vector<16x1xf32>
    %cst_15 = arith.constant 3.200000e+01 : f32
    %20 = vector.broadcast %cst_15 : f32 to vector<16x1xf32>
    %21 = arith.divf %19, %20 : vector<16x1xf32>
    %22 = vector.broadcast %14 : vector<16x1xf32> to vector<16x32xf32>
    %23 = arith.subf %6, %22 : vector<16x32xf32>
    %cst_16 = arith.constant 9.99999974E-6 : f32
    %24 = vector.broadcast %cst_16 : f32 to vector<16x1xf32>
    %25 = arith.addf %21, %24 : vector<16x1xf32>
    %26 = math.rsqrt %25 : vector<16x1xf32>
    %27 = vector.broadcast %26 : vector<16x1xf32> to vector<16x32xf32>
    %28 = arith.mulf %23, %27 : vector<16x32xf32>
    %29 = vector.broadcast %8 : vector<1x32xf32> to vector<16x32xf32>
    %30 = arith.mulf %28, %29 : vector<16x32xf32>
    %31 = vector.broadcast %10 : vector<1x32xf32> to vector<16x32xf32>
    %32 = arith.addf %30, %31 : vector<16x32xf32>
    %33 = vector.shape_cast %32 : vector<16x32xf32> to vector<2x8x32xf32>
    %c0_17 = arith.constant 0 : index
    %c0_18 = arith.constant 0 : index
    %c0_19 = arith.constant 0 : index
    %34 = vector.load %arg6[%c0_17, %c0_18, %c0_19] : memref<2x8x8xf32, #tpu.memory_space<vmem>>, vector<1x8x8xf32>
    %35 = vector.shape_cast %34 : vector<1x8x8xf32> to vector<8x8xf32>
    %36 = vector.shape_cast %35 : vector<8x8xf32> to vector<1x8x8xf32>
    %37 = vector.broadcast %36 : vector<1x8x8xf32> to vector<2x8x8xf32>
    %c0_20 = arith.constant 0 : index
    %c0_21 = arith.constant 0 : index
    %c0_22 = arith.constant 0 : index
    %38 = vector.load %arg8[%c0_20, %c0_21, %c0_22] : memref<2x8x8xf32, #tpu.memory_space<vmem>>, vector<1x8x8xf32>
    %39 = vector.shape_cast %38 : vector<1x8x8xf32> to vector<8x8xf32>
    %40 = vector.shape_cast %39 : vector<8x8xf32> to vector<1x8x8xf32>
    %41 = vector.broadcast %40 : vector<1x8x8xf32> to vector<2x8x8xf32>
    "tpu.trace_start"() <{level = 10 : i32, message = "bnm,bmd->bnd"}> : () -> ()
    %cst_23 = arith.constant dense<0.000000e+00> : vector<2x8x32xf32>
    %42 = tpu.matmul %37, %33, %cst_23 {dimension_numbers = #tpu.dot_dimension_numbers<[2], [1], [1], [2], [0, 0, 0, 1, 1, 2], [0], [0]>} : vector<2x8x8xf32>, vector<2x8x32xf32>, vector<2x8x32xf32> -> vector<2x8x32xf32>
    "tpu.trace_stop"() : () -> ()
    %c0_24 = arith.constant 0 : index
    %c0_25 = arith.constant 0 : index
    %c0_26 = arith.constant 0 : index
    %43 = vector.load %arg7[%c0_24, %c0_25, %c0_26] : memref<2x8x1xf32, #tpu.memory_space<vmem>>, vector<1x8x1xf32>
    %44 = vector.shape_cast %43 : vector<1x8x1xf32> to vector<8x1xf32>
    %45 = vector.shape_cast %44 : vector<8x1xf32> to vector<1x8x1xf32>
    %46 = vector.broadcast %45 : vector<1x8x1xf32> to vector<2x8x32xf32>
    %47 = arith.addf %42, %46 : vector<2x8x32xf32>
    %48 = arith.mulf %47, %47 : vector<2x8x32xf32>
    %49 = arith.mulf %47, %48 : vector<2x8x32xf32>
    %cst_27 = arith.constant 4.471500e-02 : f32
    %50 = vector.broadcast %cst_27 : f32 to vector<2x8x32xf32>
    %51 = arith.mulf %50, %49 : vector<2x8x32xf32>
    %52 = arith.addf %47, %51 : vector<2x8x32xf32>
    %cst_28 = arith.constant 0.797884583 : f32
    %53 = vector.broadcast %cst_28 : f32 to vector<2x8x32xf32>
    %54 = arith.mulf %53, %52 : vector<2x8x32xf32>
    %55 = math.tanh %54 : vector<2x8x32xf32>
    %cst_29 = arith.constant 1.000000e+00 : f32
    %56 = vector.broadcast %cst_29 : f32 to vector<2x8x32xf32>
    %57 = arith.addf %56, %55 : vector<2x8x32xf32>
    %cst_30 = arith.constant 5.000000e-01 : f32
    %58 = vector.broadcast %cst_30 : f32 to vector<2x8x32xf32>
    %59 = arith.mulf %58, %57 : vector<2x8x32xf32>
    %60 = arith.mulf %47, %59 : vector<2x8x32xf32>
    "tpu.trace_start"() <{level = 10 : i32, message = "bnm,bmd->bnd"}> : () -> ()
    %cst_31 = arith.constant dense<0.000000e+00> : vector<2x8x32xf32>
    %61 = tpu.matmul %41, %60, %cst_31 {dimension_numbers = #tpu.dot_dimension_numbers<[2], [1], [1], [2], [0, 0, 0, 1, 1, 2], [0], [0]>} : vector<2x8x8xf32>, vector<2x8x32xf32>, vector<2x8x32xf32> -> vector<2x8x32xf32>
    "tpu.trace_stop"() : () -> ()
    %c0_32 = arith.constant 0 : index
    %c0_33 = arith.constant 0 : index
    %c0_34 = arith.constant 0 : index
    %62 = vector.load %arg9[%c0_32, %c0_33, %c0_34] : memref<2x8x1xf32, #tpu.memory_space<vmem>>, vector<1x8x1xf32>
    %63 = vector.shape_cast %62 : vector<1x8x1xf32> to vector<8x1xf32>
    %64 = vector.shape_cast %63 : vector<8x1xf32> to vector<1x8x1xf32>
    %65 = vector.broadcast %64 : vector<1x8x1xf32> to vector<2x8x32xf32>
    %66 = arith.addf %61, %65 : vector<2x8x32xf32>
    %67 = vector.shape_cast %66 : vector<2x8x32xf32> to vector<16x32xf32>
    %68 = arith.addf %6, %67 : vector<16x32xf32>
    %c0_35 = arith.constant 0 : index
    %c0_36 = arith.constant 0 : index
    %c0_37 = arith.constant 0 : index
    %69 = vector.load %arg10[%c0_35, %c0_36, %c0_37] : memref<2x1x32xf32, #tpu.memory_space<vmem>>, vector<1x1x32xf32>
    %70 = vector.shape_cast %69 : vector<1x1x32xf32> to vector<1x32xf32>
    %c0_38 = arith.constant 0 : index
    %c0_39 = arith.constant 0 : index
    %c0_40 = arith.constant 0 : index
    %71 = vector.load %arg11[%c0_38, %c0_39, %c0_40] : memref<2x1x32xf32, #tpu.memory_space<vmem>>, vector<1x1x32xf32>
    %72 = vector.shape_cast %71 : vector<1x1x32xf32> to vector<1x32xf32>
    %cst_41 = arith.constant dense<0.000000e+00> : vector<16xf32>
    %73 = vector.multi_reduction <add>, %68, %cst_41 [1] : vector<16x32xf32> to vector<16xf32>
    %74 = vector.shape_cast %73 : vector<16xf32> to vector<16x1xf32>
    %cst_42 = arith.constant 3.200000e+01 : f32
    %75 = vector.broadcast %cst_42 : f32 to vector<16x1xf32>
    %76 = arith.divf %74, %75 : vector<16x1xf32>
    %77 = vector.broadcast %76 : vector<16x1xf32> to vector<16x32xf32>
    %78 = arith.subf %68, %77 : vector<16x32xf32>
    %79 = arith.mulf %78, %78 : vector<16x32xf32>
    %cst_43 = arith.constant dense<0.000000e+00> : vector<16xf32>
    %80 = vector.multi_reduction <add>, %79, %cst_43 [1] : vector<16x32xf32> to vector<16xf32>
    %81 = vector.shape_cast %80 : vector<16xf32> to vector<16x1xf32>
    %cst_44 = arith.constant 3.200000e+01 : f32
    %82 = vector.broadcast %cst_44 : f32 to vector<16x1xf32>
    %83 = arith.divf %81, %82 : vector<16x1xf32>
    %84 = vector.broadcast %76 : vector<16x1xf32> to vector<16x32xf32>
    %85 = arith.subf %68, %84 : vector<16x32xf32>
    %cst_45 = arith.constant 9.99999974E-6 : f32
    %86 = vector.broadcast %cst_45 : f32 to vector<16x1xf32>
    %87 = arith.addf %83, %86 : vector<16x1xf32>
    %88 = math.rsqrt %87 : vector<16x1xf32>
    %89 = vector.broadcast %88 : vector<16x1xf32> to vector<16x32xf32>
    %90 = arith.mulf %85, %89 : vector<16x32xf32>
    %91 = vector.broadcast %70 : vector<1x32xf32> to vector<16x32xf32>
    %92 = arith.mulf %90, %91 : vector<16x32xf32>
    %93 = vector.broadcast %72 : vector<1x32xf32> to vector<16x32xf32>
    %94 = arith.addf %92, %93 : vector<16x32xf32>
    %c0_46 = arith.constant 0 : index
    %c0_47 = arith.constant 0 : index
    %c0_48 = arith.constant 0 : index
    %95 = vector.load %arg12[%c0_46, %c0_47, %c0_48] : memref<2x32x32xf32, #tpu.memory_space<vmem>>, vector<1x32x32xf32>
    %96 = vector.shape_cast %95 : vector<1x32x32xf32> to vector<32x32xf32>
    %cst_49 = arith.constant dense<0.000000e+00> : vector<16x32xf32>
    %97 = tpu.matmul %94, %96, %cst_49 {dimension_numbers = #tpu.dot_dimension_numbers<[1], [0], [0], [1], [0, 0, 1, 1], [], []>} : vector<16x32xf32>, vector<32x32xf32>, vector<16x32xf32> -> vector<16x32xf32>
    %c0_50 = arith.constant 0 : index
    %c0_51 = arith.constant 0 : index
    %c0_52 = arith.constant 0 : index
    %98 = vector.load %arg13[%c0_50, %c0_51, %c0_52] : memref<2x1x32xf32, #tpu.memory_space<vmem>>, vector<1x1x32xf32>
    %99 = vector.shape_cast %98 : vector<1x1x32xf32> to vector<1x32xf32>
    %100 = vector.broadcast %99 : vector<1x32xf32> to vector<16x32xf32>
    %101 = arith.addf %97, %100 : vector<16x32xf32>
    %102 = arith.mulf %101, %101 : vector<16x32xf32>
    %103 = arith.mulf %101, %102 : vector<16x32xf32>
    %cst_53 = arith.constant 4.471500e-02 : f32
    %104 = vector.broadcast %cst_53 : f32 to vector<16x32xf32>
    %105 = arith.mulf %104, %103 : vector<16x32xf32>
    %106 = arith.addf %101, %105 : vector<16x32xf32>
    %cst_54 = arith.constant 0.797884583 : f32
    %107 = vector.broadcast %cst_54 : f32 to vector<16x32xf32>
    %108 = arith.mulf %107, %106 : vector<16x32xf32>
    %109 = math.tanh %108 : vector<16x32xf32>
    %cst_55 = arith.constant 1.000000e+00 : f32
    %110 = vector.broadcast %cst_55 : f32 to vector<16x32xf32>
    %111 = arith.addf %110, %109 : vector<16x32xf32>
    %cst_56 = arith.constant 5.000000e-01 : f32
    %112 = vector.broadcast %cst_56 : f32 to vector<16x32xf32>
    %113 = arith.mulf %112, %111 : vector<16x32xf32>
    %114 = arith.mulf %101, %113 : vector<16x32xf32>
    %c0_57 = arith.constant 0 : index
    %c0_58 = arith.constant 0 : index
    %c0_59 = arith.constant 0 : index
    %115 = vector.load %arg14[%c0_57, %c0_58, %c0_59] : memref<2x32x32xf32, #tpu.memory_space<vmem>>, vector<1x32x32xf32>
    %116 = vector.shape_cast %115 : vector<1x32x32xf32> to vector<32x32xf32>
    %cst_60 = arith.constant dense<0.000000e+00> : vector<16x32xf32>
    %117 = tpu.matmul %114, %116, %cst_60 {dimension_numbers = #tpu.dot_dimension_numbers<[1], [0], [0], [1], [0, 0, 1, 1], [], []>} : vector<16x32xf32>, vector<32x32xf32>, vector<16x32xf32> -> vector<16x32xf32>
    %c0_61 = arith.constant 0 : index
    %c0_62 = arith.constant 0 : index
    %c0_63 = arith.constant 0 : index
    %118 = vector.load %arg15[%c0_61, %c0_62, %c0_63] : memref<2x1x32xf32, #tpu.memory_space<vmem>>, vector<1x1x32xf32>
    %119 = vector.shape_cast %118 : vector<1x1x32xf32> to vector<1x32xf32>
    %120 = vector.broadcast %119 : vector<1x32xf32> to vector<16x32xf32>
    %121 = arith.addf %117, %120 : vector<16x32xf32>
    %122 = arith.addf %68, %121 : vector<16x32xf32>
    %c1 = arith.constant 1 : index
    %c0_64 = arith.constant 0 : index
    %c0_65 = arith.constant 0 : index
    %123 = vector.load %arg4[%c1, %c0_64, %c0_65] : memref<2x1x32xf32, #tpu.memory_space<vmem>>, vector<1x1x32xf32>
    %124 = vector.shape_cast %123 : vector<1x1x32xf32> to vector<1x32xf32>
    %c1_66 = arith.constant 1 : index
    %c0_67 = arith.constant 0 : index
    %c0_68 = arith.constant 0 : index
    %125 = vector.load %arg5[%c1_66, %c0_67, %c0_68] : memref<2x1x32xf32, #tpu.memory_space<vmem>>, vector<1x1x32xf32>
    %126 = vector.shape_cast %125 : vector<1x1x32xf32> to vector<1x32xf32>
    %cst_69 = arith.constant dense<0.000000e+00> : vector<16xf32>
    %127 = vector.multi_reduction <add>, %122, %cst_69 [1] : vector<16x32xf32> to vector<16xf32>
    %128 = vector.shape_cast %127 : vector<16xf32> to vector<16x1xf32>
    %cst_70 = arith.constant 3.200000e+01 : f32
    %129 = vector.broadcast %cst_70 : f32 to vector<16x1xf32>
    %130 = arith.divf %128, %129 : vector<16x1xf32>
    %131 = vector.broadcast %130 : vector<16x1xf32> to vector<16x32xf32>
    %132 = arith.subf %122, %131 : vector<16x32xf32>
    %133 = arith.mulf %132, %132 : vector<16x32xf32>
    %cst_71 = arith.constant dense<0.000000e+00> : vector<16xf32>
    %134 = vector.multi_reduction <add>, %133, %cst_71 [1] : vector<16x32xf32> to vector<16xf32>
    %135 = vector.shape_cast %134 : vector<16xf32> to vector<16x1xf32>
    %cst_72 = arith.constant 3.200000e+01 : f32
    %136 = vector.broadcast %cst_72 : f32 to vector<16x1xf32>
    %137 = arith.divf %135, %136 : vector<16x1xf32>
    %138 = vector.broadcast %130 : vector<16x1xf32> to vector<16x32xf32>
    %139 = arith.subf %122, %138 : vector<16x32xf32>
    %cst_73 = arith.constant 9.99999974E-6 : f32
    %140 = vector.broadcast %cst_73 : f32 to vector<16x1xf32>
    %141 = arith.addf %137, %140 : vector<16x1xf32>
    %142 = math.rsqrt %141 : vector<16x1xf32>
    %143 = vector.broadcast %142 : vector<16x1xf32> to vector<16x32xf32>
    %144 = arith.mulf %139, %143 : vector<16x32xf32>
    %145 = vector.broadcast %124 : vector<1x32xf32> to vector<16x32xf32>
    %146 = arith.mulf %144, %145 : vector<16x32xf32>
    %147 = vector.broadcast %126 : vector<1x32xf32> to vector<16x32xf32>
    %148 = arith.addf %146, %147 : vector<16x32xf32>
    %149 = vector.shape_cast %148 : vector<16x32xf32> to vector<2x8x32xf32>
    %c1_74 = arith.constant 1 : index
    %c0_75 = arith.constant 0 : index
    %c0_76 = arith.constant 0 : index
    %150 = vector.load %arg6[%c1_74, %c0_75, %c0_76] : memref<2x8x8xf32, #tpu.memory_space<vmem>>, vector<1x8x8xf32>
    %151 = vector.shape_cast %150 : vector<1x8x8xf32> to vector<8x8xf32>
    %152 = vector.shape_cast %151 : vector<8x8xf32> to vector<1x8x8xf32>
    %153 = vector.broadcast %152 : vector<1x8x8xf32> to vector<2x8x8xf32>
    %c1_77 = arith.constant 1 : index
    %c0_78 = arith.constant 0 : index
    %c0_79 = arith.constant 0 : index
    %154 = vector.load %arg8[%c1_77, %c0_78, %c0_79] : memref<2x8x8xf32, #tpu.memory_space<vmem>>, vector<1x8x8xf32>
    %155 = vector.shape_cast %154 : vector<1x8x8xf32> to vector<8x8xf32>
    %156 = vector.shape_cast %155 : vector<8x8xf32> to vector<1x8x8xf32>
    %157 = vector.broadcast %156 : vector<1x8x8xf32> to vector<2x8x8xf32>
    "tpu.trace_start"() <{level = 10 : i32, message = "bnm,bmd->bnd"}> : () -> ()
    %cst_80 = arith.constant dense<0.000000e+00> : vector<2x8x32xf32>
    %158 = tpu.matmul %153, %149, %cst_80 {dimension_numbers = #tpu.dot_dimension_numbers<[2], [1], [1], [2], [0, 0, 0, 1, 1, 2], [0], [0]>} : vector<2x8x8xf32>, vector<2x8x32xf32>, vector<2x8x32xf32> -> vector<2x8x32xf32>
    "tpu.trace_stop"() : () -> ()
    %c1_81 = arith.constant 1 : index
    %c0_82 = arith.constant 0 : index
    %c0_83 = arith.constant 0 : index
    %159 = vector.load %arg7[%c1_81, %c0_82, %c0_83] : memref<2x8x1xf32, #tpu.memory_space<vmem>>, vector<1x8x1xf32>
    %160 = vector.shape_cast %159 : vector<1x8x1xf32> to vector<8x1xf32>
    %161 = vector.shape_cast %160 : vector<8x1xf32> to vector<1x8x1xf32>
    %162 = vector.broadcast %161 : vector<1x8x1xf32> to vector<2x8x32xf32>
    %163 = arith.addf %158, %162 : vector<2x8x32xf32>
    %164 = arith.mulf %163, %163 : vector<2x8x32xf32>
    %165 = arith.mulf %163, %164 : vector<2x8x32xf32>
    %cst_84 = arith.constant 4.471500e-02 : f32
    %166 = vector.broadcast %cst_84 : f32 to vector<2x8x32xf32>
    %167 = arith.mulf %166, %165 : vector<2x8x32xf32>
    %168 = arith.addf %163, %167 : vector<2x8x32xf32>
    %cst_85 = arith.constant 0.797884583 : f32
    %169 = vector.broadcast %cst_85 : f32 to vector<2x8x32xf32>
    %170 = arith.mulf %169, %168 : vector<2x8x32xf32>
    %171 = math.tanh %170 : vector<2x8x32xf32>
    %cst_86 = arith.constant 1.000000e+00 : f32
    %172 = vector.broadcast %cst_86 : f32 to vector<2x8x32xf32>
    %173 = arith.addf %172, %171 : vector<2x8x32xf32>
    %cst_87 = arith.constant 5.000000e-01 : f32
    %174 = vector.broadcast %cst_87 : f32 to vector<2x8x32xf32>
    %175 = arith.mulf %174, %173 : vector<2x8x32xf32>
    %176 = arith.mulf %163, %175 : vector<2x8x32xf32>
    "tpu.trace_start"() <{level = 10 : i32, message = "bnm,bmd->bnd"}> : () -> ()
    %cst_88 = arith.constant dense<0.000000e+00> : vector<2x8x32xf32>
    %177 = tpu.matmul %157, %176, %cst_88 {dimension_numbers = #tpu.dot_dimension_numbers<[2], [1], [1], [2], [0, 0, 0, 1, 1, 2], [0], [0]>} : vector<2x8x8xf32>, vector<2x8x32xf32>, vector<2x8x32xf32> -> vector<2x8x32xf32>
    "tpu.trace_stop"() : () -> ()
    %c1_89 = arith.constant 1 : index
    %c0_90 = arith.constant 0 : index
    %c0_91 = arith.constant 0 : index
    %178 = vector.load %arg9[%c1_89, %c0_90, %c0_91] : memref<2x8x1xf32, #tpu.memory_space<vmem>>, vector<1x8x1xf32>
    %179 = vector.shape_cast %178 : vector<1x8x1xf32> to vector<8x1xf32>
    %180 = vector.shape_cast %179 : vector<8x1xf32> to vector<1x8x1xf32>
    %181 = vector.broadcast %180 : vector<1x8x1xf32> to vector<2x8x32xf32>
    %182 = arith.addf %177, %181 : vector<2x8x32xf32>
    %183 = vector.shape_cast %182 : vector<2x8x32xf32> to vector<16x32xf32>
    %184 = arith.addf %122, %183 : vector<16x32xf32>
    %c1_92 = arith.constant 1 : index
    %c0_93 = arith.constant 0 : index
    %c0_94 = arith.constant 0 : index
    %185 = vector.load %arg10[%c1_92, %c0_93, %c0_94] : memref<2x1x32xf32, #tpu.memory_space<vmem>>, vector<1x1x32xf32>
    %186 = vector.shape_cast %185 : vector<1x1x32xf32> to vector<1x32xf32>
    %c1_95 = arith.constant 1 : index
    %c0_96 = arith.constant 0 : index
    %c0_97 = arith.constant 0 : index
    %187 = vector.load %arg11[%c1_95, %c0_96, %c0_97] : memref<2x1x32xf32, #tpu.memory_space<vmem>>, vector<1x1x32xf32>
    %188 = vector.shape_cast %187 : vector<1x1x32xf32> to vector<1x32xf32>
    %cst_98 = arith.constant dense<0.000000e+00> : vector<16xf32>
    %189 = vector.multi_reduction <add>, %184, %cst_98 [1] : vector<16x32xf32> to vector<16xf32>
    %190 = vector.shape_cast %189 : vector<16xf32> to vector<16x1xf32>
    %cst_99 = arith.constant 3.200000e+01 : f32
    %191 = vector.broadcast %cst_99 : f32 to vector<16x1xf32>
    %192 = arith.divf %190, %191 : vector<16x1xf32>
    %193 = vector.broadcast %192 : vector<16x1xf32> to vector<16x32xf32>
    %194 = arith.subf %184, %193 : vector<16x32xf32>
    %195 = arith.mulf %194, %194 : vector<16x32xf32>
    %cst_100 = arith.constant dense<0.000000e+00> : vector<16xf32>
    %196 = vector.multi_reduction <add>, %195, %cst_100 [1] : vector<16x32xf32> to vector<16xf32>
    %197 = vector.shape_cast %196 : vector<16xf32> to vector<16x1xf32>
    %cst_101 = arith.constant 3.200000e+01 : f32
    %198 = vector.broadcast %cst_101 : f32 to vector<16x1xf32>
    %199 = arith.divf %197, %198 : vector<16x1xf32>
    %200 = vector.broadcast %192 : vector<16x1xf32> to vector<16x32xf32>
    %201 = arith.subf %184, %200 : vector<16x32xf32>
    %cst_102 = arith.constant 9.99999974E-6 : f32
    %202 = vector.broadcast %cst_102 : f32 to vector<16x1xf32>
    %203 = arith.addf %199, %202 : vector<16x1xf32>
    %204 = math.rsqrt %203 : vector<16x1xf32>
    %205 = vector.broadcast %204 : vector<16x1xf32> to vector<16x32xf32>
    %206 = arith.mulf %201, %205 : vector<16x32xf32>
    %207 = vector.broadcast %186 : vector<1x32xf32> to vector<16x32xf32>
    %208 = arith.mulf %206, %207 : vector<16x32xf32>
    %209 = vector.broadcast %188 : vector<1x32xf32> to vector<16x32xf32>
    %210 = arith.addf %208, %209 : vector<16x32xf32>
    %c1_103 = arith.constant 1 : index
    %c0_104 = arith.constant 0 : index
    %c0_105 = arith.constant 0 : index
    %211 = vector.load %arg12[%c1_103, %c0_104, %c0_105] : memref<2x32x32xf32, #tpu.memory_space<vmem>>, vector<1x32x32xf32>
    %212 = vector.shape_cast %211 : vector<1x32x32xf32> to vector<32x32xf32>
    %cst_106 = arith.constant dense<0.000000e+00> : vector<16x32xf32>
    %213 = tpu.matmul %210, %212, %cst_106 {dimension_numbers = #tpu.dot_dimension_numbers<[1], [0], [0], [1], [0, 0, 1, 1], [], []>} : vector<16x32xf32>, vector<32x32xf32>, vector<16x32xf32> -> vector<16x32xf32>
    %c1_107 = arith.constant 1 : index
    %c0_108 = arith.constant 0 : index
    %c0_109 = arith.constant 0 : index
    %214 = vector.load %arg13[%c1_107, %c0_108, %c0_109] : memref<2x1x32xf32, #tpu.memory_space<vmem>>, vector<1x1x32xf32>
    %215 = vector.shape_cast %214 : vector<1x1x32xf32> to vector<1x32xf32>
    %216 = vector.broadcast %215 : vector<1x32xf32> to vector<16x32xf32>
    %217 = arith.addf %213, %216 : vector<16x32xf32>
    %218 = arith.mulf %217, %217 : vector<16x32xf32>
    %219 = arith.mulf %217, %218 : vector<16x32xf32>
    %cst_110 = arith.constant 4.471500e-02 : f32
    %220 = vector.broadcast %cst_110 : f32 to vector<16x32xf32>
    %221 = arith.mulf %220, %219 : vector<16x32xf32>
    %222 = arith.addf %217, %221 : vector<16x32xf32>
    %cst_111 = arith.constant 0.797884583 : f32
    %223 = vector.broadcast %cst_111 : f32 to vector<16x32xf32>
    %224 = arith.mulf %223, %222 : vector<16x32xf32>
    %225 = math.tanh %224 : vector<16x32xf32>
    %cst_112 = arith.constant 1.000000e+00 : f32
    %226 = vector.broadcast %cst_112 : f32 to vector<16x32xf32>
    %227 = arith.addf %226, %225 : vector<16x32xf32>
    %cst_113 = arith.constant 5.000000e-01 : f32
    %228 = vector.broadcast %cst_113 : f32 to vector<16x32xf32>
    %229 = arith.mulf %228, %227 : vector<16x32xf32>
    %230 = arith.mulf %217, %229 : vector<16x32xf32>
    %c1_114 = arith.constant 1 : index
    %c0_115 = arith.constant 0 : index
    %c0_116 = arith.constant 0 : index
    %231 = vector.load %arg14[%c1_114, %c0_115, %c0_116] : memref<2x32x32xf32, #tpu.memory_space<vmem>>, vector<1x32x32xf32>
    %232 = vector.shape_cast %231 : vector<1x32x32xf32> to vector<32x32xf32>
    %cst_117 = arith.constant dense<0.000000e+00> : vector<16x32xf32>
    %233 = tpu.matmul %230, %232, %cst_117 {dimension_numbers = #tpu.dot_dimension_numbers<[1], [0], [0], [1], [0, 0, 1, 1], [], []>} : vector<16x32xf32>, vector<32x32xf32>, vector<16x32xf32> -> vector<16x32xf32>
    %c1_118 = arith.constant 1 : index
    %c0_119 = arith.constant 0 : index
    %c0_120 = arith.constant 0 : index
    %234 = vector.load %arg15[%c1_118, %c0_119, %c0_120] : memref<2x1x32xf32, #tpu.memory_space<vmem>>, vector<1x1x32xf32>
    %235 = vector.shape_cast %234 : vector<1x1x32xf32> to vector<1x32xf32>
    %236 = vector.broadcast %235 : vector<1x32xf32> to vector<16x32xf32>
    %237 = arith.addf %233, %236 : vector<16x32xf32>
    %238 = arith.addf %184, %237 : vector<16x32xf32>
    %c0_121 = arith.constant 0 : index
    %c0_122 = arith.constant 0 : index
    %239 = vector.load %arg16[%c0_121, %c0_122] : memref<1x32xf32, #tpu.memory_space<vmem>>, vector<1x32xf32>
    %c0_123 = arith.constant 0 : index
    %c0_124 = arith.constant 0 : index
    %240 = vector.load %arg17[%c0_123, %c0_124] : memref<1x32xf32, #tpu.memory_space<vmem>>, vector<1x32xf32>
    %cst_125 = arith.constant dense<0.000000e+00> : vector<16xf32>
    %241 = vector.multi_reduction <add>, %238, %cst_125 [1] : vector<16x32xf32> to vector<16xf32>
    %242 = vector.shape_cast %241 : vector<16xf32> to vector<16x1xf32>
    %cst_126 = arith.constant 3.200000e+01 : f32
    %243 = vector.broadcast %cst_126 : f32 to vector<16x1xf32>
    %244 = arith.divf %242, %243 : vector<16x1xf32>
    %245 = vector.broadcast %244 : vector<16x1xf32> to vector<16x32xf32>
    %246 = arith.subf %238, %245 : vector<16x32xf32>
    %247 = arith.mulf %246, %246 : vector<16x32xf32>
    %cst_127 = arith.constant dense<0.000000e+00> : vector<16xf32>
    %248 = vector.multi_reduction <add>, %247, %cst_127 [1] : vector<16x32xf32> to vector<16xf32>
    %249 = vector.shape_cast %248 : vector<16xf32> to vector<16x1xf32>
    %cst_128 = arith.constant 3.200000e+01 : f32
    %250 = vector.broadcast %cst_128 : f32 to vector<16x1xf32>
    %251 = arith.divf %249, %250 : vector<16x1xf32>
    %252 = vector.broadcast %244 : vector<16x1xf32> to vector<16x32xf32>
    %253 = arith.subf %238, %252 : vector<16x32xf32>
    %cst_129 = arith.constant 9.99999974E-6 : f32
    %254 = vector.broadcast %cst_129 : f32 to vector<16x1xf32>
    %255 = arith.addf %251, %254 : vector<16x1xf32>
    %256 = math.rsqrt %255 : vector<16x1xf32>
    %257 = vector.broadcast %256 : vector<16x1xf32> to vector<16x32xf32>
    %258 = arith.mulf %253, %257 : vector<16x32xf32>
    %259 = vector.broadcast %239 : vector<1x32xf32> to vector<16x32xf32>
    %260 = arith.mulf %258, %259 : vector<16x32xf32>
    %261 = vector.broadcast %240 : vector<1x32xf32> to vector<16x32xf32>
    %262 = arith.addf %260, %261 : vector<16x32xf32>
    %263 = vector.shape_cast %262 : vector<16x32xf32> to vector<2x8x32xf32>
    %cst_130 = arith.constant dense<0.000000e+00> : vector<2x32xf32>
    %264 = vector.multi_reduction <add>, %263, %cst_130 [1] : vector<2x8x32xf32> to vector<2x32xf32>
    %cst_131 = arith.constant 8.000000e+00 : f32
    %265 = vector.broadcast %cst_131 : f32 to vector<2x32xf32>
    %266 = arith.divf %264, %265 : vector<2x32xf32>
    %c0_132 = arith.constant 0 : index
    %c0_133 = arith.constant 0 : index
    %267 = vector.load %arg18[%c0_132, %c0_133] : memref<32x128xf32, #tpu.memory_space<vmem>>, vector<32x128xf32>
    %cst_134 = arith.constant dense<0.000000e+00> : vector<2x128xf32>
    %268 = tpu.matmul %266, %267, %cst_134 {dimension_numbers = #tpu.dot_dimension_numbers<[1], [0], [0], [1], [0, 0, 1, 1], [], []>} : vector<2x32xf32>, vector<32x128xf32>, vector<2x128xf32> -> vector<2x128xf32>
    %c0_135 = arith.constant 0 : index
    %c0_136 = arith.constant 0 : index
    %269 = vector.load %arg19[%c0_135, %c0_136] : memref<1x128xf32, #tpu.memory_space<vmem>>, vector<1x128xf32>
    %270 = vector.broadcast %269 : vector<1x128xf32> to vector<2x128xf32>
    %271 = arith.addf %268, %270 : vector<2x128xf32>
    %272 = vector.shape_cast %271 : vector<2x128xf32> to vector<2x1x128xf32>
    %c0_137 = arith.constant 0 : index
    %c0_138 = arith.constant 0 : index
    %c0_139 = arith.constant 0 : index
    %273 = vector.load %arg20[%c0_137, %c0_138, %c0_139] : memref<2x1x128xf32, #tpu.memory_space<vmem>>, vector<2x1x128xf32>
    tpu.vector_store %arg20[%c0_137, %c0_138, %c0_139], %272 {strides = array<i32>} : memref<2x1x128xf32, #tpu.memory_space<vmem>>, vector<2x1x128xf32>,
    return
  }
  func.func @transform_0(%arg0: i32) -> (i32, i32, i32) {
    %c0_i32 = arith.constant 0 : i32
    %c0_i32_0 = arith.constant 0 : i32
    %c0_i32_1 = arith.constant 0 : i32
    return %arg0, %c0_i32, %c0_i32_0 : i32, i32, i32
  }
  func.func @transform_1(%arg0: i32) -> (i32, i32) {
    %c0_i32 = arith.constant 0 : i32
    %c0_i32_0 = arith.constant 0 : i32
    %c0_i32_1 = arith.constant 0 : i32
    return %c0_i32, %c0_i32_0 : i32, i32
  }
  func.func @transform_2(%arg0: i32) -> (i32, i32) {
    %c0_i32 = arith.constant 0 : i32
    %c0_i32_0 = arith.constant 0 : i32
    %c0_i32_1 = arith.constant 0 : i32
    return %c0_i32, %c0_i32_0 : i32, i32
  }
  func.func @transform_3(%arg0: i32) -> (i32, i32, i32) {
    %c0_i32 = arith.constant 0 : i32
    %c0_i32_0 = arith.constant 0 : i32
    %c0_i32_1 = arith.constant 0 : i32
    %c0_i32_2 = arith.constant 0 : i32
    return %c0_i32, %c0_i32_0, %c0_i32_1 : i32, i32, i32
  }
  func.func @transform_4(%arg0: i32) -> (i32, i32, i32) {
    %c0_i32 = arith.constant 0 : i32
    %c0_i32_0 = arith.constant 0 : i32
    %c0_i32_1 = arith.constant 0 : i32
    %c0_i32_2 = arith.constant 0 : i32
    return %c0_i32, %c0_i32_0, %c0_i32_1 : i32, i32, i32
  }
  func.func @transform_5(%arg0: i32) -> (i32, i32, i32) {
    %c0_i32 = arith.constant 0 : i32
    %c0_i32_0 = arith.constant 0 : i32
    %c0_i32_1 = arith.constant 0 : i32
    %c0_i32_2 = arith.constant 0 : i32
    return %c0_i32, %c0_i32_0, %c0_i32_1 : i32, i32, i32
  }
  func.func @transform_6(%arg0: i32) -> (i32, i32, i32) {
    %c0_i32 = arith.constant 0 : i32
    %c0_i32_0 = arith.constant 0 : i32
    %c0_i32_1 = arith.constant 0 : i32
    %c0_i32_2 = arith.constant 0 : i32
    return %c0_i32, %c0_i32_0, %c0_i32_1 : i32, i32, i32
  }
  func.func @transform_7(%arg0: i32) -> (i32, i32, i32) {
    %c0_i32 = arith.constant 0 : i32
    %c0_i32_0 = arith.constant 0 : i32
    %c0_i32_1 = arith.constant 0 : i32
    %c0_i32_2 = arith.constant 0 : i32
    return %c0_i32, %c0_i32_0, %c0_i32_1 : i32, i32, i32
  }
  func.func @transform_8(%arg0: i32) -> (i32, i32, i32) {
    %c0_i32 = arith.constant 0 : i32
    %c0_i32_0 = arith.constant 0 : i32
    %c0_i32_1 = arith.constant 0 : i32
    %c0_i32_2 = arith.constant 0 : i32
    return %c0_i32, %c0_i32_0, %c0_i32_1 : i32, i32, i32
  }
  func.func @transform_9(%arg0: i32) -> (i32, i32, i32) {
    %c0_i32 = arith.constant 0 : i32
    %c0_i32_0 = arith.constant 0 : i32
    %c0_i32_1 = arith.constant 0 : i32
    %c0_i32_2 = arith.constant 0 : i32
    return %c0_i32, %c0_i32_0, %c0_i32_1 : i32, i32, i32
  }
  func.func @transform_10(%arg0: i32) -> (i32, i32, i32) {
    %c0_i32 = arith.constant 0 : i32
    %c0_i32_0 = arith.constant 0 : i32
    %c0_i32_1 = arith.constant 0 : i32
    %c0_i32_2 = arith.constant 0 : i32
    return %c0_i32, %c0_i32_0, %c0_i32_1 : i32, i32, i32
  }
  func.func @transform_11(%arg0: i32) -> (i32, i32, i32) {
    %c0_i32 = arith.constant 0 : i32
    %c0_i32_0 = arith.constant 0 : i32
    %c0_i32_1 = arith.constant 0 : i32
    %c0_i32_2 = arith.constant 0 : i32
    return %c0_i32, %c0_i32_0, %c0_i32_1 : i32, i32, i32
  }
  func.func @transform_12(%arg0: i32) -> (i32, i32, i32) {
    %c0_i32 = arith.constant 0 : i32
    %c0_i32_0 = arith.constant 0 : i32
    %c0_i32_1 = arith.constant 0 : i32
    %c0_i32_2 = arith.constant 0 : i32
    return %c0_i32, %c0_i32_0, %c0_i32_1 : i32, i32, i32
  }
  func.func @transform_13(%arg0: i32) -> (i32, i32, i32) {
    %c0_i32 = arith.constant 0 : i32
    %c0_i32_0 = arith.constant 0 : i32
    %c0_i32_1 = arith.constant 0 : i32
    %c0_i32_2 = arith.constant 0 : i32
    return %c0_i32, %c0_i32_0, %c0_i32_1 : i32, i32, i32
  }
  func.func @transform_14(%arg0: i32) -> (i32, i32, i32) {
    %c0_i32 = arith.constant 0 : i32
    %c0_i32_0 = arith.constant 0 : i32
    %c0_i32_1 = arith.constant 0 : i32
    %c0_i32_2 = arith.constant 0 : i32
    return %c0_i32, %c0_i32_0, %c0_i32_1 : i32, i32, i32
  }
  func.func @transform_15(%arg0: i32) -> (i32, i32) {
    %c0_i32 = arith.constant 0 : i32
    %c0_i32_0 = arith.constant 0 : i32
    %c0_i32_1 = arith.constant 0 : i32
    return %c0_i32, %c0_i32_0 : i32, i32
  }
  func.func @transform_16(%arg0: i32) -> (i32, i32) {
    %c0_i32 = arith.constant 0 : i32
    %c0_i32_0 = arith.constant 0 : i32
    %c0_i32_1 = arith.constant 0 : i32
    return %c0_i32, %c0_i32_0 : i32, i32
  }
  func.func @transform_17(%arg0: i32) -> (i32, i32) {
    %c0_i32 = arith.constant 0 : i32
    %c0_i32_0 = arith.constant 0 : i32
    %c0_i32_1 = arith.constant 0 : i32
    return %c0_i32, %c0_i32_0 : i32, i32
  }
  func.func @transform_18(%arg0: i32) -> (i32, i32) {
    %c0_i32 = arith.constant 0 : i32
    %c0_i32_0 = arith.constant 0 : i32
    %c0_i32_1 = arith.constant 0 : i32
    return %c0_i32, %c0_i32_0 : i32, i32
  }
  func.func @transform_19(%arg0: i32) -> (i32, i32, i32) {
    %c0_i32 = arith.constant 0 : i32
    %c0_i32_0 = arith.constant 0 : i32
    %c0_i32_1 = arith.constant 0 : i32
    return %arg0, %c0_i32, %c0_i32_0 : i32, i32, i32
  }
}

</mosaic_0001>

<llo_original>
// kernel: tpu_custom_call.1
$region0: #{tpu_custom_call.1}
  #allocation0 [shape = 'u32[]', space=smem, size = 0x4, offset = 0x4, fixed_abs, tag = 'smem constant byte address 0x4 - core index']
  #allocation1 [shape = 'u32[144,128]{1,0:T(1,128)}', space=vmem, size = 0x12000, scoped, tag = 'internal scratch']
  %s0 = inlined_call_operand.hbm [shape: f32[2,8,32], index: 0, kind: input, shape index: {}]
  %s1 = inlined_call_operand.vmem [shape: f32[32,32], index: 1, kind: input, shape index: {}]
  %s2 = inlined_call_operand.vmem [shape: f32[1,32], index: 2, kind: input, shape index: {}]
  %s3 = inlined_call_operand.hbm [shape: f32[2,1,32], index: 3, kind: input, shape index: {}]
  %s4 = inlined_call_operand.hbm [shape: f32[2,1,32], index: 4, kind: input, shape index: {}]
  %s5 = inlined_call_operand.hbm [shape: f32[2,8,8], index: 5, kind: input, shape index: {}]
  %s6 = inlined_call_operand.vmem [shape: f32[2,8,1], index: 6, kind: input, shape index: {}]
  %s7 = inlined_call_operand.hbm [shape: f32[2,8,8], index: 7, kind: input, shape index: {}]
  %s8 = inlined_call_operand.vmem [shape: f32[2,8,1], index: 8, kind: input, shape index: {}]
  %s9 = inlined_call_operand.hbm [shape: f32[2,1,32], index: 9, kind: input, shape index: {}]
  %s10 = inlined_call_operand.hbm [shape: f32[2,1,32], index: 10, kind: input, shape index: {}]
  %s11 = inlined_call_operand.hbm [shape: f32[2,32,32], index: 11, kind: input, shape index: {}]
  %s12 = inlined_call_operand.hbm [shape: f32[2,1,32], index: 12, kind: input, shape index: {}]
  %s13 = inlined_call_operand.hbm [shape: f32[2,32,32], index: 13, kind: input, shape index: {}]
  %s14 = inlined_call_operand.hbm [shape: f32[2,1,32], index: 14, kind: input, shape index: {}]
  %s15 = inlined_call_operand.hbm [shape: f32[1,32], index: 15, kind: input, shape index: {}]
  %s16 = inlined_call_operand.hbm [shape: f32[1,32], index: 16, kind: input, shape index: {}]
  %s17 = inlined_call_operand.vmem [shape: f32[32,128], index: 17, kind: input, shape index: {}]
  %s18 = inlined_call_operand.vmem [shape: f32[1,128], index: 18, kind: input, shape index: {}]
  %s19 = inlined_call_operand.hbm [shape: f32[2,1,128], index: 19, kind: output, shape index: {}]
  %s20 = sld [smem:[#allocation0]]
  $region138: #{tpu_custom_call.1} parent=0
    _
  %s22 = ssub.s32 1, %s20
  %s23 = scalar_select 0, %s22, %s20
  $region1: #{tpu_custom_call.1} parent=0
    #allocation2 [shape = 'u8[8192]{0}', space=vmem, size = 0x2000, scoped, tag = 'input window, operand 0, single buffered']
    #allocation3 [shape = 's32[1]{0}', space=sflag, size = 0x4, scoped, tag = 'scoped memory for tpu_custom_call.1']
    #allocation4 [shape = 's32[1]{0}', space=sflag, size = 0x4, scoped, tag = 'scoped memory for tpu_custom_call.1']
    #allocation5 [shape = 'u8[1024]{0}', space=vmem, size = 0x400, scoped, tag = 'input window, operand 3, single buffered']
    #allocation6 [shape = 's32[1]{0}', space=sflag, size = 0x4, scoped, tag = 'scoped memory for tpu_custom_call.1']
    #allocation7 [shape = 'u8[1024]{0}', space=vmem, size = 0x400, scoped, tag = 'input window, operand 4, single buffered']
    #allocation8 [shape = 'u8[8192]{0}', space=vmem, size = 0x2000, scoped, tag = 'input window, operand 5, single buffered']
    #allocation9 [shape = 's32[1]{0}', space=sflag, size = 0x4, scoped, tag = 'scoped memory for tpu_custom_call.1']
    #allocation10 [shape = 'u8[8192]{0}', space=vmem, size = 0x2000, scoped, tag = 'input window, operand 7, single buffered']
    #allocation11 [shape = 'u8[1024]{0}', space=vmem, size = 0x400, scoped, tag = 'input window, operand 9, single buffered']
    #allocation12 [shape = 's32[1]{0}', space=sflag, size = 0x4, scoped, tag = 'scoped memory for tpu_custom_call.1']
    #allocation13 [shape = 'u8[1024]{0}', space=vmem, size = 0x400, scoped, tag = 'input window, operand 10, single buffered']
    #allocation14 [shape = 'u8[32768]{0}', space=vmem, size = 0x8000, scoped, tag = 'input window, operand 11, single buffered']
    #allocation15 [shape = 's32[1]{0}', space=sflag, size = 0x4, scoped, tag = 'scoped memory for tpu_custom_call.1']
    #allocation16 [shape = 'u8[1024]{0}', space=vmem, size = 0x400, scoped, tag = 'input window, operand 12, single buffered']
    #allocation17 [shape = 'u8[32768]{0}', space=vmem, size = 0x8000, scoped, tag = 'input window, operand 13, single buffered']
    #allocation18 [shape = 's32[1]{0}', space=sflag, size = 0x4, scoped, tag = 'scoped memory for tpu_custom_call.1']
    #allocation19 [shape = 'u8[1024]{0}', space=vmem, size = 0x400, scoped, tag = 'input window, operand 14, single buffered']
    #allocation20 [shape = 'u8[512]{0}', space=vmem, size = 0x400, scoped, tag = 'input window, operand 15, single buffered']
    #allocation21 [shape = 's32[1]{0}', space=sflag, size = 0x4, scoped, tag = 'scoped memory for tpu_custom_call.1']
    #allocation22 [shape = 'u8[512]{0}', space=vmem, size = 0x400, scoped, tag = 'input window, operand 16, single buffered']
    #allocation23 [shape = 'u8[1024]{0}', space=vmem, size = 0x400, scoped, tag = 'output window, operand 0, single buffered']
    %24 = vsyncpa [#allocation3], 0
    %25 = vsyncpa [#allocation6], 0
    %26 = vsyncpa [#allocation9], 0
    %27 = vsyncpa [#allocation12], 0
    %28 = vsyncpa [#allocation15], 0
    %29 = vsyncpa [#allocation18], 0
    %30 = vsyncpa [#allocation21], 0
    %31 = vsyncpa [#allocation4], 0
    // Predicated region
    $region2: #{tpu_custom_call.1} parent=1 // pred_check
      _
    $region3: #{tpu_custom_call.1} parent=1 // pred_check_branch
      %33 = sbr.rel (0) target = $region5
    $region4: #{tpu_custom_call.1} parent=1 // pred_region
      %s35 = ssub.s32 256, 256
      %36 = vsyncadd [#allocation3], %s35
      %s37 = sshll.u32 [#allocation2], 4
      %s38 = int_to_ptr.vmem [resolvable:$true] %s37
      %43 = dma.hbm_to_vmem [thread:$0]  %s0, 256, %s38, [#allocation3], 128, 128, 8
    $region5: #{tpu_custom_call.1} parent=1 // pred_fallthru
      _
    // Predicated region
    $region6: #{tpu_custom_call.1} parent=1 // pred_check
      _
    $region7: #{tpu_custom_call.1} parent=1 // pred_check_branch
      %45 = sbr.rel (0) target = $region9
    $region8: #{tpu_custom_call.1} parent=1 // pred_region
      _
    $region9: #{tpu_custom_call.1} parent=1 // pred_fallthru
      _
    // Predicated region
    $region10: #{tpu_custom_call.1} parent=1 // pred_check
      _
    $region11: #{tpu_custom_call.1} parent=1 // pred_check_branch
      %47 = sbr.rel (0) target = $region13
    $region12: #{tpu_custom_call.1} parent=1 // pred_region
      _
    $region13: #{tpu_custom_call.1} parent=1 // pred_fallthru
      _
    // Predicated region
    $region14: #{tpu_custom_call.1} parent=1 // pred_check
      _
    $region15: #{tpu_custom_call.1} parent=1 // pred_check_branch
      %49 = sbr.rel (0) target = $region17
    $region16: #{tpu_custom_call.1} parent=1 // pred_region
      %s51 = ssub.s32 32, 32
      %52 = vsyncadd [#allocation6], %s51
      %s53 = sshll.u32 [#allocation5], 4
      %s54 = int_to_ptr.vmem [resolvable:$true] %s53
      %59 = dma.hbm_to_vmem [thread:$0]  %s3, 32, %s54, [#allocation6], 16, 16, 1
    $region17: #{tpu_custom_call.1} parent=1 // pred_fallthru
      _
    // Predicated region
    $region18: #{tpu_custom_call.1} parent=1 // pred_check
      _
    $region19: #{tpu_custom_call.1} parent=1 // pred_check_branch
      %61 = sbr.rel (0) target = $region21
    $region20: #{tpu_custom_call.1} parent=1 // pred_region
      %s63 = ssub.s32 32, 32
      %64 = vsyncadd [#allocation6], %s63
      %s65 = sshll.u32 [#allocation7], 4
      %s66 = int_to_ptr.vmem [resolvable:$true] %s65
      %71 = dma.hbm_to_vmem [thread:$0]  %s4, 32, %s66, [#allocation6], 16, 16, 1
    $region21: #{tpu_custom_call.1} parent=1 // pred_fallthru
      _
    // Predicated region
    $region22: #{tpu_custom_call.1} parent=1 // pred_check
      _
    $region23: #{tpu_custom_call.1} parent=1 // pred_check_branch
      %73 = sbr.rel (0) target = $region25
    $region24: #{tpu_custom_call.1} parent=1 // pred_region
      %s75 = ssub.s32 256, 256
      %76 = vsyncadd [#allocation9], %s75
      %s77 = sshll.u32 [#allocation8], 4
      %s78 = int_to_ptr.vmem [resolvable:$true] %s77
      %83 = dma.hbm_to_vmem [thread:$0]  %s5, 256, %s78, [#allocation9], 128, 128, 8
    $region25: #{tpu_custom_call.1} parent=1 // pred_fallthru
      _
    // Predicated region
    $region26: #{tpu_custom_call.1} parent=1 // pred_check
      _
    $region27: #{tpu_custom_call.1} parent=1 // pred_check_branch
      %85 = sbr.rel (0) target = $region29
    $region28: #{tpu_custom_call.1} parent=1 // pred_region
      _
    $region29: #{tpu_custom_call.1} parent=1 // pred_fallthru
      _
    // Predicated region
    $region30: #{tpu_custom_call.1} parent=1 // pred_check
      _
    $region31: #{tpu_custom_call.1} parent=1 // pred_check_branch
      %87 = sbr.rel (0) target = $region33
    $region32: #{tpu_custom_call.1} parent=1 // pred_region
      %s89 = ssub.s32 256, 256
      %90 = vsyncadd [#allocation9], %s89
      %s91 = sshll.u32 [#allocation10], 4
      %s92 = int_to_ptr.vmem [resolvable:$true] %s91
      %97 = dma.hbm_to_vmem [thread:$0]  %s7, 256, %s92, [#allocation9], 128, 128, 8
    $region33: #{tpu_custom_call.1} parent=1 // pred_fallthru
      _
    // Predicated region
    $region34: #{tpu_custom_call.1} parent=1 // pred_check
      _
    $region35: #{tpu_custom_call.1} parent=1 // pred_check_branch
      %99 = sbr.rel (0) target = $region37
    $region36: #{tpu_custom_call.1} parent=1 // pred_region
      _
    $region37: #{tpu_custom_call.1} parent=1 // pred_fallthru
      _
    // Predicated region
    $region38: #{tpu_custom_call.1} parent=1 // pred_check
      _
    $region39: #{tpu_custom_call.1} parent=1 // pred_check_branch
      %101 = sbr.rel (0) target = $region41
    $region40: #{tpu_custom_call.1} parent=1 // pred_region
      %s103 = ssub.s32 32, 32
      %104 = vsyncadd [#allocation12], %s103
      %s105 = sshll.u32 [#allocation11], 4
      %s106 = int_to_ptr.vmem [resolvable:$true] %s105
      %111 = dma.hbm_to_vmem [thread:$0]  %s9, 32, %s106, [#allocation12], 16, 16, 1
    $region41: #{tpu_custom_call.1} parent=1 // pred_fallthru
      _
    // Predicated region
    $region42: #{tpu_custom_call.1} parent=1 // pred_check
      _
    $region43: #{tpu_custom_call.1} parent=1 // pred_check_branch
      %113 = sbr.rel (0) target = $region45
    $region44: #{tpu_custom_call.1} parent=1 // pred_region
      %s115 = ssub.s32 32, 32
      %116 = vsyncadd [#allocation12], %s115
      %s117 = sshll.u32 [#allocation13], 4
      %s118 = int_to_ptr.vmem [resolvable:$true] %s117
      %123 = dma.hbm_to_vmem [thread:$0]  %s10, 32, %s118, [#allocation12], 16, 16, 1
    $region45: #{tpu_custom_call.1} parent=1 // pred_fallthru
      _
    // Predicated region
    $region46: #{tpu_custom_call.1} parent=1 // pred_check
      _
    $region47: #{tpu_custom_call.1} parent=1 // pred_check_branch
      %125 = sbr.rel (0) target = $region49
    $region48: #{tpu_custom_call.1} parent=1 // pred_region
      %s127 = ssub.s32 1024, 1024
      %128 = vsyncadd [#allocation15], %s127
      %s129 = sshll.u32 [#allocation14], 4
      %s130 = int_to_ptr.vmem [resolvable:$true] %s129
      %135 = dma.hbm_to_vmem [thread:$0]  %s11, 1024, %s130, [#allocation15], 128, 128, 8
    $region49: #{tpu_custom_call.1} parent=1 // pred_fallthru
      _
    // Predicated region
    $region50: #{tpu_custom_call.1} parent=1 // pred_check
      _
    $region51: #{tpu_custom_call.1} parent=1 // pred_check_branch
      %137 = sbr.rel (0) target = $region53
    $region52: #{tpu_custom_call.1} parent=1 // pred_region
      %s139 = ssub.s32 32, 32
      %140 = vsyncadd [#allocation15], %s139
      %s141 = sshll.u32 [#allocation16], 4
      %s142 = int_to_ptr.vmem [resolvable:$true] %s141
      %147 = dma.hbm_to_vmem [thread:$0]  %s12, 32, %s142, [#allocation15], 16, 16, 1
    $region53: #{tpu_custom_call.1} parent=1 // pred_fallthru
      _
    // Predicated region
    $region54: #{tpu_custom_call.1} parent=1 // pred_check
      _
    $region55: #{tpu_custom_call.1} parent=1 // pred_check_branch
      %149 = sbr.rel (0) target = $region57
    $region56: #{tpu_custom_call.1} parent=1 // pred_region
      %s151 = ssub.s32 1024, 1024
      %152 = vsyncadd [#allocation18], %s151
      %s153 = sshll.u32 [#allocation17], 4
      %s154 = int_to_ptr.vmem [resolvable:$true] %s153
      %159 = dma.hbm_to_vmem [thread:$0]  %s13, 1024, %s154, [#allocation18], 128, 128, 8
    $region57: #{tpu_custom_call.1} parent=1 // pred_fallthru
      _
    // Predicated region
    $region58: #{tpu_custom_call.1} parent=1 // pred_check
      _
    $region59: #{tpu_custom_call.1} parent=1 // pred_check_branch
      %161 = sbr.rel (0) target = $region61
    $region60: #{tpu_custom_call.1} parent=1 // pred_region
      %s163 = ssub.s32 32, 32
      %164 = vsyncadd [#allocation18], %s163
      %s165 = sshll.u32 [#allocation19], 4
      %s166 = int_to_ptr.vmem [resolvable:$true] %s165
      %171 = dma.hbm_to_vmem [thread:$0]  %s14, 32, %s166, [#allocation18], 16, 16, 1
    $region61: #{tpu_custom_call.1} parent=1 // pred_fallthru
      _
    // Predicated region
    $region62: #{tpu_custom_call.1} parent=1 // pred_check
      _
    $region63: #{tpu_custom_call.1} parent=1 // pred_check_branch
      %173 = sbr.rel (0) target = $region65
    $region64: #{tpu_custom_call.1} parent=1 // pred_region
      %s175 = ssub.s32 16, 16
      %176 = vsyncadd [#allocation21], %s175
      %s178 = sshll.u32 [#allocation20], 4
      %s179 = int_to_ptr.vmem [resolvable:$true] %s178
      %181 = dma.hbm_to_vmem [thread:$0]  %s15, 16, %s179, [#allocation21]
    $region65: #{tpu_custom_call.1} parent=1 // pred_fallthru
      _
    // Predicated region
    $region66: #{tpu_custom_call.1} parent=1 // pred_check
      _
    $region67: #{tpu_custom_call.1} parent=1 // pred_check_branch
      %183 = sbr.rel (0) target = $region69
    $region68: #{tpu_custom_call.1} parent=1 // pred_region
      %s185 = ssub.s32 16, 16
      %186 = vsyncadd [#allocation21], %s185
      %s188 = sshll.u32 [#allocation22], 4
      %s189 = int_to_ptr.vmem [resolvable:$true] %s188
      %191 = dma.hbm_to_vmem [thread:$0]  %s16, 16, %s189, [#allocation21]
    $region69: #{tpu_custom_call.1} parent=1 // pred_fallthru
      _
    // Predicated region
    $region70: #{tpu_custom_call.1} parent=1 // pred_check
      _
    $region71: #{tpu_custom_call.1} parent=1 // pred_check_branch
      %193 = sbr.rel (0) target = $region73
    $region72: #{tpu_custom_call.1} parent=1 // pred_region
      _
    $region73: #{tpu_custom_call.1} parent=1 // pred_fallthru
      _
    // Predicated region
    $region74: #{tpu_custom_call.1} parent=1 // pred_check
      _
    $region75: #{tpu_custom_call.1} parent=1 // pred_check_branch
      %195 = sbr.rel (0) target = $region77
    $region76: #{tpu_custom_call.1} parent=1 // pred_region
      _
    $region77: #{tpu_custom_call.1} parent=1 // pred_fallthru
      _
    // Predicated region
    $region78: #{tpu_custom_call.1} parent=1 // pred_check
      _
    $region79: #{tpu_custom_call.1} parent=1 // pred_check_branch
      %197 = sbr.rel (0) target = $region81
    $region80: #{tpu_custom_call.1} parent=1 // pred_region
      %198 = dma.done [#allocation3], 256
    $region81: #{tpu_custom_call.1} parent=1 // pred_fallthru
      _
    // Predicated region
    $region82: #{tpu_custom_call.1} parent=1 // pred_check
      _
    $region83: #{tpu_custom_call.1} parent=1 // pred_check_branch
      %200 = sbr.rel (0) target = $region85
    $region84: #{tpu_custom_call.1} parent=1 // pred_region
      %201 = dma.done [#allocation6], 32
    $region85: #{tpu_custom_call.1} parent=1 // pred_fallthru
      _
    // Predicated region
    $region86: #{tpu_custom_call.1} parent=1 // pred_check
      _
    $region87: #{tpu_custom_call.1} parent=1 // pred_check_branch
      %203 = sbr.rel (0) target = $region89
    $region88: #{tpu_custom_call.1} parent=1 // pred_region
      %204 = dma.done [#allocation6], 32
    $region89: #{tpu_custom_call.1} parent=1 // pred_fallthru
      _
    // Predicated region
    $region90: #{tpu_custom_call.1} parent=1 // pred_check
      _
    $region91: #{tpu_custom_call.1} parent=1 // pred_check_branch
      %206 = sbr.rel (0) target = $region93
    $region92: #{tpu_custom_call.1} parent=1 // pred_region
      %207 = dma.done [#allocation9], 256
    $region93: #{tpu_custom_call.1} parent=1 // pred_fallthru
      _
    // Predicated region
    $region94: #{tpu_custom_call.1} parent=1 // pred_check
      _
    $region95: #{tpu_custom_call.1} parent=1 // pred_check_branch
      %209 = sbr.rel (0) target = $region97
    $region96: #{tpu_custom_call.1} parent=1 // pred_region
      %210 = dma.done [#allocation9], 256
    $region97: #{tpu_custom_call.1} parent=1 // pred_fallthru
      _
    // Predicated region
    $region98: #{tpu_custom_call.1} parent=1 // pred_check
      _
    $region99: #{tpu_custom_call.1} parent=1 // pred_check_branch
      %212 = sbr.rel (0) target = $region101
    $region100: #{tpu_custom_call.1} parent=1 // pred_region
      %213 = dma.done [#allocation12], 32
    $region101: #{tpu_custom_call.1} parent=1 // pred_fallthru
      _
    // Predicated region
    $region102: #{tpu_custom_call.1} parent=1 // pred_check
      _
    $region103: #{tpu_custom_call.1} parent=1 // pred_check_branch
      %215 = sbr.rel (0) target = $region105
    $region104: #{tpu_custom_call.1} parent=1 // pred_region
      %216 = dma.done [#allocation12], 32
    $region105: #{tpu_custom_call.1} parent=1 // pred_fallthru
      _
    // Predicated region
    $region106: #{tpu_custom_call.1} parent=1 // pred_check
      _
    $region107: #{tpu_custom_call.1} parent=1 // pred_check_branch
      %218 = sbr.rel (0) target = $region109
    $region108: #{tpu_custom_call.1} parent=1 // pred_region
      %219 = dma.done [#allocation15], 1024
    $region109: #{tpu_custom_call.1} parent=1 // pred_fallthru
      _
    // Predicated region
    $region110: #{tpu_custom_call.1} parent=1 // pred_check
      _
    $region111: #{tpu_custom_call.1} parent=1 // pred_check_branch
      %221 = sbr.rel (0) target = $region113
    $region112: #{tpu_custom_call.1} parent=1 // pred_region
      %222 = dma.done [#allocation15], 32
    $region113: #{tpu_custom_call.1} parent=1 // pred_fallthru
      _
    // Predicated region
    $region114: #{tpu_custom_call.1} parent=1 // pred_check
      _
    $region115: #{tpu_custom_call.1} parent=1 // pred_check_branch
      %224 = sbr.rel (0) target = $region117
    $region116: #{tpu_custom_call.1} parent=1 // pred_region
      %225 = dma.done [#allocation18], 1024
    $region117: #{tpu_custom_call.1} parent=1 // pred_fallthru
      _
    // Predicated region
    $region118: #{tpu_custom_call.1} parent=1 // pred_check
      _
    $region119: #{tpu_custom_call.1} parent=1 // pred_check_branch
      %227 = sbr.rel (0) target = $region121
    $region120: #{tpu_custom_call.1} parent=1 // pred_region
      %228 = dma.done [#allocation18], 32
    $region121: #{tpu_custom_call.1} parent=1 // pred_fallthru
      _
    // Predicated region
    $region122: #{tpu_custom_call.1} parent=1 // pred_check
      _
    $region123: #{tpu_custom_call.1} parent=1 // pred_check_branch
      %230 = sbr.rel (0) target = $region125
    $region124: #{tpu_custom_call.1} parent=1 // pred_region
      %231 = dma.done [#allocation21], 16
    $region125: #{tpu_custom_call.1} parent=1 // pred_fallthru
      _
    // Predicated region
    $region126: #{tpu_custom_call.1} parent=1 // pred_check
      _
    $region127: #{tpu_custom_call.1} parent=1 // pred_check_branch
      %233 = sbr.rel (0) target = $region129
    $region128: #{tpu_custom_call.1} parent=1 // pred_region
      %234 = dma.done [#allocation21], 16
    $region129: #{tpu_custom_call.1} parent=1 // pred_fallthru
      _
    %v235 = vld [vmem:[#allocation2] sm:$0xff]
    %v236 = vld [vmem:[#allocation2 + $0x8] sm:$0xff]
    %v237 = vld [vmem:[%s1] sm:$0xff]
    %v238 = vld [vmem:[%s1 + $0x8] sm:$0xff]
    %v239 = vld [vmem:[%s1 + $0x10] sm:$0xff]
    %v240 = vld [vmem:[%s1 + $0x18] sm:$0xff]
    %v241 = vld [vmem:[%s2] sm:$0x1]
    %v243 = vlaneseq
    %v244 = vshrl.u32 %v243, 7
    %v245 = vsub.s32 0, %v244
    %v246 = vrot.slane %v241, %v245
    %vm248 = vcmask 261120
    %v250 = vsel %vm248, %v235, 0
    %v253 = vsel %vm248, %v236, 0
    %255 = vmatprep.subr.mxu0 0.0
    %256 = vmatpush1.msra.mxu0 0.0
    %257 = vmatprep.subr.mxu0 0.0
    %258 = vmatpush1.msra.mxu0 0.0
    %259 = vmatprep.subr.mxu0 0.0
    %260 = vmatpush1.msra.mxu0 0.0
    %261 = vmatprep.subr.mxu0 0.0
    %262 = vmatpush1.msra.mxu0 0.0
    %263 = vmatprep.subr.mxu0 0.0
    %264 = vmatpush1.msra.mxu0 0.0
    %265 = vmatprep.subr.mxu0 0.0
    %266 = vmatpush1.msra.mxu0 0.0
    %267 = vmatprep.subr.mxu0 0.0
    %268 = vmatpush1.msra.mxu0 0.0
    %269 = vmatprep.subr.mxu0 0.0
    %270 = vmatpush1.msra.mxu0 0.0
    %271 = vmatprep.subr.mxu0 0.0
    %272 = vmatpush1.msra.mxu0 0.0
    %273 = vmatprep.subr.mxu0 0.0
    %274 = vmatpush1.msra.mxu0 0.0
    %275 = vmatprep.subr.mxu0 0.0
    %276 = vmatpush1.msra.mxu0 0.0
    %277 = vmatprep.subr.mxu0 0.0
    %278 = vmatpush1.msra.mxu0 0.0
    %279 = vmatprep.subr.mxu0 0.0
    %280 = vmatpush1.msra.mxu0 %v240
    %281 = vmatprep.subr.mxu0 0.0
    %282 = vmatpush1.msra.mxu0 %v239
    %283 = vmatprep.subr.mxu0 0.0
    %284 = vmatpush1.msra.mxu0 %v238
    %285 = vmatprep.subr.mxu0 0.0
    %286 = vmatpush1.msra.mxu0 %v237
    %287 = vmatprep.subr.mxu0 0.0
    %288 = vmatpush2.msra.mxu0 0.0
    %289 = vmatprep.subr.mxu0 0.0
    %290 = vmatpush2.msra.mxu0 0.0
    %291 = vmatprep.subr.mxu0 0.0
    %292 = vmatpush2.msra.mxu0 0.0
    %293 = vmatprep.subr.mxu0 0.0
    %294 = vmatpush2.msra.mxu0 0.0
    %295 = vmatprep.subr.mxu0 0.0
    %296 = vmatpush2.msra.mxu0 0.0
    %297 = vmatprep.subr.mxu0 0.0
    %298 = vmatpush2.msra.mxu0 0.0
    %299 = vmatprep.subr.mxu0 0.0
    %300 = vmatpush2.msra.mxu0 0.0
    %301 = vmatprep.subr.mxu0 0.0
    %302 = vmatpush2.msra.mxu0 0.0
    %303 = vmatprep.subr.mxu0 0.0
    %304 = vmatpush2.msra.mxu0 0.0
    %305 = vmatprep.subr.mxu0 0.0
    %306 = vmatpush2.msra.mxu0 0.0
    %307 = vmatprep.subr.mxu0 0.0
    %308 = vmatpush2.msra.mxu0 0.0
    %309 = vmatprep.subr.mxu0 0.0
    %310 = vmatpush2.msra.mxu0 0.0
    %311 = vmatprep.subr.mxu0 0.0
    %312 = vmatpush2.msra.mxu0 0.0
    %313 = vmatprep.subr.mxu0 0.0
    %314 = vmatpush2.msra.mxu0 0.0
    %315 = vmatprep.subr.mxu0 0.0
    %316 = vmatpush2.msra.mxu0 0.0
    %317 = vmatprep.subr.mxu0 0.0
    %318 = vmatpush2.msra.mxu0 0.0
    %319 = vmatprep.mubr.f32.mxu0 0.0
    %320 = vmatmul.mubr.f32.gmra.mxu0 %v250
    %v321 = vpop.f32.mrf.mxu0
    %v322 = vadd.f32 %v246, %v321
    %v323 = vpop.f32.mrf.mxu0
    %324 = vmatprep.mubr.f32.mxu0 0.0
    %325 = vmatmul.mubr.f32.gmra.mxu0 %v253
    %v326 = vpop.f32.mrf.mxu0
    %v327 = vadd.f32 %v246, %v326
    %v328 = vpop.f32.mrf.mxu0
    %329 = vdwg.mxu0
    %v330 = vld [vmem:[#allocation5] sm:$0x1]
    %v331 = vld [vmem:[#allocation7] sm:$0x1]
    %v332 = vsel %vm248, %v322, 0.0
    %333 = vadd.xlane.f32.xlu0 %v332
    %v334 = vpop.xlane.xlu0 %333
    %v335 = vsel %vm248, %v327, 0.0
    %336 = vadd.xlane.f32.xlu0 %v335
    %v337 = vpop.xlane.xlu0 %336
    %v338 = vrcp.pop 32.0
    %v339 = vmul.f32 %v334, %v338
    %v340 = vmul.f32 %v337, %v338
    %v341 = vsub.f32 %v322, %v339
    %v342 = vsub.f32 %v327, %v340
    %v343 = vmul.f32 %v341, %v341
    %v344 = vmul.f32 %v342, %v342
    %v345 = vsel %vm248, %v343, 0.0
    %346 = vadd.xlane.f32.xlu0 %v345
    %v347 = vpop.xlane.xlu0 %346
    %v348 = vsel %vm248, %v344, 0.0
    %349 = vadd.xlane.f32.xlu0 %v348
    %v350 = vpop.xlane.xlu0 %349
    %v351 = vmul.f32 %v347, %v338
    %v352 = vmul.f32 %v350, %v338
    %v353 = vadd.f32 %v351, 1e-05
    %v354 = vadd.f32 %v352, 1e-05
    %v355 = vrsqrt.pop %v353
    %v356 = vrsqrt.pop %v354
    %v357 = vmul.f32 %v341, %v355
    %v358 = vmul.f32 %v342, %v356
    %v360 = vlaneseq
    %v361 = vshrl.u32 %v360, 7
    %v362 = vsub.s32 0, %v361
    %v363 = vrot.slane %v330, %v362
    %v365 = vmul.f32 %v357, %v363
    %v366 = vmul.f32 %v358, %v363
    %v368 = vlaneseq
    %v369 = vshrl.u32 %v368, 7
    %v370 = vsub.s32 0, %v369
    %v371 = vrot.slane %v331, %v370
    %v373 = vadd.f32 %v365, %v371
    %v374 = vadd.f32 %v366, %v371
    %v375 = vld [vmem:[#allocation8] sm:$0xff]
    %v376 = vld [vmem:[#allocation10] sm:$0xff]
    %v377 = vld [vmem:[%s6] sm:$0xff]
    %379 = vset.pattern.permute.xlu0 0
    %380 = vperm.xlu0 %379, %v377
    %v381 = vpop.permute.xlu0 %380
    %vm383 = vcmask 64512
    %v385 = vsel %vm383, %v375, 0
    %387 = vmatprep.subr.mxu0 0.0
    %388 = vmatpush1.msra.mxu0 0.0
    %389 = vmatprep.subr.mxu0 0.0
    %390 = vmatpush1.msra.mxu0 0.0
    %391 = vmatprep.subr.mxu0 0.0
    %392 = vmatpush1.msra.mxu0 0.0
    %393 = vmatprep.subr.mxu0 0.0
    %394 = vmatpush1.msra.mxu0 0.0
    %395 = vmatprep.subr.mxu0 0.0
    %396 = vmatpush1.msra.mxu0 0.0
    %397 = vmatprep.subr.mxu0 0.0
    %398 = vmatpush1.msra.mxu0 0.0
    %399 = vmatprep.subr.mxu0 0.0
    %400 = vmatpush1.msra.mxu0 0.0
    %401 = vmatprep.subr.mxu0 0.0
    %402 = vmatpush1.msra.mxu0 0.0
    %403 = vmatprep.subr.mxu0 0.0
    %404 = vmatpush1.msra.mxu0 0.0
    %405 = vmatprep.subr.mxu0 0.0
    %406 = vmatpush1.msra.mxu0 0.0
    %407 = vmatprep.subr.mxu0 0.0
    %408 = vmatpush1.msra.mxu0 0.0
    %409 = vmatprep.subr.mxu0 0.0
    %410 = vmatpush1.msra.mxu0 0.0
    %411 = vmatprep.subr.mxu0 0.0
    %412 = vmatpush1.msra.mxu0 0.0
    %413 = vmatprep.subr.mxu0 0.0
    %414 = vmatpush1.msra.mxu0 0.0
    %415 = vmatprep.subr.mxu0 0.0
    %416 = vmatpush1.msra.mxu0 0.0
    %417 = vmatprep.subr.mxu0 0.0
    %418 = vmatpush1.msra.mxu0 %v373
    %419 = vmatprep.subr.mxu0 0.0
    %420 = vmatpush2.msra.mxu0 0.0
    %421 = vmatprep.subr.mxu0 0.0
    %422 = vmatpush2.msra.mxu0 0.0
    %423 = vmatprep.subr.mxu0 0.0
    %424 = vmatpush2.msra.mxu0 0.0
    %425 = vmatprep.subr.mxu0 0.0
    %426 = vmatpush2.msra.mxu0 0.0
    %427 = vmatprep.subr.mxu0 0.0
    %428 = vmatpush2.msra.mxu0 0.0
    %429 = vmatprep.subr.mxu0 0.0
    %430 = vmatpush2.msra.mxu0 0.0
    %431 = vmatprep.subr.mxu0 0.0
    %432 = vmatpush2.msra.mxu0 0.0
    %433 = vmatprep.subr.mxu0 0.0
    %434 = vmatpush2.msra.mxu0 0.0
    %435 = vmatprep.subr.mxu0 0.0
    %436 = vmatpush2.msra.mxu0 0.0
    %437 = vmatprep.subr.mxu0 0.0
    %438 = vmatpush2.msra.mxu0 0.0
    %439 = vmatprep.subr.mxu0 0.0
    %440 = vmatpush2.msra.mxu0 0.0
    %441 = vmatprep.subr.mxu0 0.0
    %442 = vmatpush2.msra.mxu0 0.0
    %443 = vmatprep.subr.mxu0 0.0
    %444 = vmatpush2.msra.mxu0 0.0
    %445 = vmatprep.subr.mxu0 0.0
    %446 = vmatpush2.msra.mxu0 0.0
    %447 = vmatprep.subr.mxu0 0.0
    %448 = vmatpush2.msra.mxu0 0.0
    %449 = vmatprep.subr.mxu0 0.0
    %450 = vmatpush2.msra.mxu0 0.0
    %451 = vmatprep.mubr.f32.mxu0 0.0
    %452 = vmatmul.mubr.f32.gmra.mxu0 %v385
    %v453 = vpop.f32.mrf.mxu0
    %v454 = vadd.f32 %v381, %v453
    %v455 = vpop.f32.mrf.mxu0
    %456 = vdwg.mxu0
    %457 = vmatprep.subr.mxu0 0.0
    %458 = vmatpush1.msra.mxu0 0.0
    %459 = vmatprep.subr.mxu0 0.0
    %460 = vmatpush1.msra.mxu0 0.0
    %461 = vmatprep.subr.mxu0 0.0
    %462 = vmatpush1.msra.mxu0 0.0
    %463 = vmatprep.subr.mxu0 0.0
    %464 = vmatpush1.msra.mxu0 0.0
    %465 = vmatprep.subr.mxu0 0.0
    %466 = vmatpush1.msra.mxu0 0.0
    %467 = vmatprep.subr.mxu0 0.0
    %468 = vmatpush1.msra.mxu0 0.0
    %469 = vmatprep.subr.mxu0 0.0
    %470 = vmatpush1.msra.mxu0 0.0
    %471 = vmatprep.subr.mxu0 0.0
    %472 = vmatpush1.msra.mxu0 0.0
    %473 = vmatprep.subr.mxu0 0.0
    %474 = vmatpush1.msra.mxu0 0.0
    %475 = vmatprep.subr.mxu0 0.0
    %476 = vmatpush1.msra.mxu0 0.0
    %477 = vmatprep.subr.mxu0 0.0
    %478 = vmatpush1.msra.mxu0 0.0
    %479 = vmatprep.subr.mxu0 0.0
    %480 = vmatpush1.msra.mxu0 0.0
    %481 = vmatprep.subr.mxu0 0.0
    %482 = vmatpush1.msra.mxu0 0.0
    %483 = vmatprep.subr.mxu0 0.0
    %484 = vmatpush1.msra.mxu0 0.0
    %485 = vmatprep.subr.mxu0 0.0
    %486 = vmatpush1.msra.mxu0 0.0
    %487 = vmatprep.subr.mxu0 0.0
    %488 = vmatpush1.msra.mxu0 %v374
    %489 = vmatprep.subr.mxu0 0.0
    %490 = vmatpush2.msra.mxu0 0.0
    %491 = vmatprep.subr.mxu0 0.0
    %492 = vmatpush2.msra.mxu0 0.0
    %493 = vmatprep.subr.mxu0 0.0
    %494 = vmatpush2.msra.mxu0 0.0
    %495 = vmatprep.subr.mxu0 0.0
    %496 = vmatpush2.msra.mxu0 0.0
    %497 = vmatprep.subr.mxu0 0.0
    %498 = vmatpush2.msra.mxu0 0.0
    %499 = vmatprep.subr.mxu0 0.0
    %500 = vmatpush2.msra.mxu0 0.0
    %501 = vmatprep.subr.mxu0 0.0
    %502 = vmatpush2.msra.mxu0 0.0
    %503 = vmatprep.subr.mxu0 0.0
    %504 = vmatpush2.msra.mxu0 0.0
    %505 = vmatprep.subr.mxu0 0.0
    %506 = vmatpush2.msra.mxu0 0.0
    %507 = vmatprep.subr.mxu0 0.0
    %508 = vmatpush2.msra.mxu0 0.0
    %509 = vmatprep.subr.mxu0 0.0
    %510 = vmatpush2.msra.mxu0 0.0
    %511 = vmatprep.subr.mxu0 0.0
    %512 = vmatpush2.msra.mxu0 0.0
    %513 = vmatprep.subr.mxu0 0.0
    %514 = vmatpush2.msra.mxu0 0.0
    %515 = vmatprep.subr.mxu0 0.0
    %516 = vmatpush2.msra.mxu0 0.0
    %517 = vmatprep.subr.mxu0 0.0
    %518 = vmatpush2.msra.mxu0 0.0
    %519 = vmatprep.subr.mxu0 0.0
    %520 = vmatpush2.msra.mxu0 0.0
    %521 = vmatprep.mubr.f32.mxu0 0.0
    %522 = vmatmul.mubr.f32.gmra.mxu0 %v385
    %v523 = vpop.f32.mrf.mxu0
    %v524 = vadd.f32 %v381, %v523
    %v525 = vpop.f32.mrf.mxu0
    %526 = vdwg.mxu0
    %v527 = vmul.f32 %v454, %v454
    %v528 = vmul.f32 %v524, %v524
    %v529 = vmul.f32 %v454, %v527
    %v530 = vmul.f32 %v524, %v528
    %v531 = vmul.f32 %v529, 0.044715
    %v532 = vmul.f32 %v530, 0.044715
    %v533 = vadd.f32 %v454, %v531
    %v534 = vadd.f32 %v524, %v532
    %v535 = vmul.f32 %v533, 0.7978846
    %v536 = vmul.f32 %v534, 0.7978846
    %v537 = vtanh.pop %v535
    %v538 = vtanh.pop %v536
    %v539 = vadd.f32 %v537, 1.0
    %v540 = vadd.f32 %v538, 1.0
    %v541 = vmul.f32 %v539, 0.5
    %v542 = vmul.f32 %v540, 0.5
    %v543 = vmul.f32 %v454, %v541
    %v544 = vmul.f32 %v524, %v542
    %v545 = vld [vmem:[%s8] sm:$0xff]
    %547 = vset.pattern.permute.xlu0 0
    %548 = vperm.xlu0 %547, %v545
    %v549 = vpop.permute.xlu0 %548
    %v552 = vsel %vm383, %v376, 0
    %554 = vmatprep.subr.mxu0 0.0
    %555 = vmatpush1.msra.mxu0 0.0
    %556 = vmatprep.subr.mxu0 0.0
    %557 = vmatpush1.msra.mxu0 0.0
    %558 = vmatprep.subr.mxu0 0.0
    %559 = vmatpush1.msra.mxu0 0.0
    %560 = vmatprep.subr.mxu0 0.0
    %561 = vmatpush1.msra.mxu0 0.0
    %562 = vmatprep.subr.mxu0 0.0
    %563 = vmatpush1.msra.mxu0 0.0
    %564 = vmatprep.subr.mxu0 0.0
    %565 = vmatpush1.msra.mxu0 0.0
    %566 = vmatprep.subr.mxu0 0.0
    %567 = vmatpush1.msra.mxu0 0.0
    %568 = vmatprep.subr.mxu0 0.0
    %569 = vmatpush1.msra.mxu0 0.0
    %570 = vmatprep.subr.mxu0 0.0
    %571 = vmatpush1.msra.mxu0 0.0
    %572 = vmatprep.subr.mxu0 0.0
    %573 = vmatpush1.msra.mxu0 0.0
    %574 = vmatprep.subr.mxu0 0.0
    %575 = vmatpush1.msra.mxu0 0.0
    %576 = vmatprep.subr.mxu0 0.0
    %577 = vmatpush1.msra.mxu0 0.0
    %578 = vmatprep.subr.mxu0 0.0
    %579 = vmatpush1.msra.mxu0 0.0
    %580 = vmatprep.subr.mxu0 0.0
    %581 = vmatpush1.msra.mxu0 0.0
    %582 = vmatprep.subr.mxu0 0.0
    %583 = vmatpush1.msra.mxu0 0.0
    %584 = vmatprep.subr.mxu0 0.0
    %585 = vmatpush1.msra.mxu0 %v543
    %586 = vmatprep.subr.mxu0 0.0
    %587 = vmatpush2.msra.mxu0 0.0
    %588 = vmatprep.subr.mxu0 0.0
    %589 = vmatpush2.msra.mxu0 0.0
    %590 = vmatprep.subr.mxu0 0.0
    %591 = vmatpush2.msra.mxu0 0.0
    %592 = vmatprep.subr.mxu0 0.0
    %593 = vmatpush2.msra.mxu0 0.0
    %594 = vmatprep.subr.mxu0 0.0
    %595 = vmatpush2.msra.mxu0 0.0
    %596 = vmatprep.subr.mxu0 0.0
    %597 = vmatpush2.msra.mxu0 0.0
    %598 = vmatprep.subr.mxu0 0.0
    %599 = vmatpush2.msra.mxu0 0.0
    %600 = vmatprep.subr.mxu0 0.0
    %601 = vmatpush2.msra.mxu0 0.0
    %602 = vmatprep.subr.mxu0 0.0
    %603 = vmatpush2.msra.mxu0 0.0
    %604 = vmatprep.subr.mxu0 0.0
    %605 = vmatpush2.msra.mxu0 0.0
    %606 = vmatprep.subr.mxu0 0.0
    %607 = vmatpush2.msra.mxu0 0.0
    %608 = vmatprep.subr.mxu0 0.0
    %609 = vmatpush2.msra.mxu0 0.0
    %610 = vmatprep.subr.mxu0 0.0
    %611 = vmatpush2.msra.mxu0 0.0
    %612 = vmatprep.subr.mxu0 0.0
    %613 = vmatpush2.msra.mxu0 0.0
    %614 = vmatprep.subr.mxu0 0.0
    %615 = vmatpush2.msra.mxu0 0.0
    %616 = vmatprep.subr.mxu0 0.0
    %617 = vmatpush2.msra.mxu0 0.0
    %618 = vmatprep.mubr.f32.mxu0 0.0
    %619 = vmatmul.mubr.f32.gmra.mxu0 %v552
    %v620 = vpop.f32.mrf.mxu0
    %v621 = vadd.f32 %v549, %v620
    %v622 = vpop.f32.mrf.mxu0
    %623 = vdwg.mxu0
    %624 = vmatprep.subr.mxu0 0.0
    %625 = vmatpush1.msra.mxu0 0.0
    %626 = vmatprep.subr.mxu0 0.0
    %627 = vmatpush1.msra.mxu0 0.0
    %628 = vmatprep.subr.mxu0 0.0
    %629 = vmatpush1.msra.mxu0 0.0
    %630 = vmatprep.subr.mxu0 0.0
    %631 = vmatpush1.msra.mxu0 0.0
    %632 = vmatprep.subr.mxu0 0.0
    %633 = vmatpush1.msra.mxu0 0.0
    %634 = vmatprep.subr.mxu0 0.0
    %635 = vmatpush1.msra.mxu0 0.0
    %636 = vmatprep.subr.mxu0 0.0
    %637 = vmatpush1.msra.mxu0 0.0
    %638 = vmatprep.subr.mxu0 0.0
    %639 = vmatpush1.msra.mxu0 0.0
    %640 = vmatprep.subr.mxu0 0.0
    %641 = vmatpush1.msra.mxu0 0.0
    %642 = vmatprep.subr.mxu0 0.0
    %643 = vmatpush1.msra.mxu0 0.0
    %644 = vmatprep.subr.mxu0 0.0
    %645 = vmatpush1.msra.mxu0 0.0
    %646 = vmatprep.subr.mxu0 0.0
    %647 = vmatpush1.msra.mxu0 0.0
    %648 = vmatprep.subr.mxu0 0.0
    %649 = vmatpush1.msra.mxu0 0.0
    %650 = vmatprep.subr.mxu0 0.0
    %651 = vmatpush1.msra.mxu0 0.0
    %652 = vmatprep.subr.mxu0 0.0
    %653 = vmatpush1.msra.mxu0 0.0
    %654 = vmatprep.subr.mxu0 0.0
    %655 = vmatpush1.msra.mxu0 %v544
    %656 = vmatprep.subr.mxu0 0.0
    %657 = vmatpush2.msra.mxu0 0.0
    %658 = vmatprep.subr.mxu0 0.0
    %659 = vmatpush2.msra.mxu0 0.0
    %660 = vmatprep.subr.mxu0 0.0
    %661 = vmatpush2.msra.mxu0 0.0
    %662 = vmatprep.subr.mxu0 0.0
    %663 = vmatpush2.msra.mxu0 0.0
    %664 = vmatprep.subr.mxu0 0.0
    %665 = vmatpush2.msra.mxu0 0.0
    %666 = vmatprep.subr.mxu0 0.0
    %667 = vmatpush2.msra.mxu0 0.0
    %668 = vmatprep.subr.mxu0 0.0
    %669 = vmatpush2.msra.mxu0 0.0
    %670 = vmatprep.subr.mxu0 0.0
    %671 = vmatpush2.msra.mxu0 0.0
    %672 = vmatprep.subr.mxu0 0.0
    %673 = vmatpush2.msra.mxu0 0.0
    %674 = vmatprep.subr.mxu0 0.0
    %675 = vmatpush2.msra.mxu0 0.0
    %676 = vmatprep.subr.mxu0 0.0
    %677 = vmatpush2.msra.mxu0 0.0
    %678 = vmatprep.subr.mxu0 0.0
    %679 = vmatpush2.msra.mxu0 0.0
    %680 = vmatprep.subr.mxu0 0.0
    %681 = vmatpush2.msra.mxu0 0.0
    %682 = vmatprep.subr.mxu0 0.0
    %683 = vmatpush2.msra.mxu0 0.0
    %684 = vmatprep.subr.mxu0 0.0
    %685 = vmatpush2.msra.mxu0 0.0
    %686 = vmatprep.subr.mxu0 0.0
    %687 = vmatpush2.msra.mxu0 0.0
    %688 = vmatprep.mubr.f32.mxu0 0.0
    %689 = vmatmul.mubr.f32.gmra.mxu0 %v552
    %v690 = vpop.f32.mrf.mxu0
    %v691 = vadd.f32 %v549, %v690
    %v692 = vpop.f32.mrf.mxu0
    %693 = vdwg.mxu0
    %v694 = vadd.f32 %v322, %v621
    %v695 = vadd.f32 %v327, %v691
    %v696 = vld [vmem:[#allocation11] sm:$0x1]
    %v697 = vld [vmem:[#allocation13] sm:$0x1]
    %v698 = vsel %vm248, %v694, 0.0
    %699 = vadd.xlane.f32.xlu0 %v698
    %v700 = vpop.xlane.xlu0 %699
    %v701 = vsel %vm248, %v695, 0.0
    %702 = vadd.xlane.f32.xlu0 %v701
    %v703 = vpop.xlane.xlu0 %702
    %v704 = vmul.f32 %v700, %v338
    %v705 = vmul.f32 %v703, %v338
    %v706 = vsub.f32 %v694, %v704
    %v707 = vsub.f32 %v695, %v705
    %v708 = vmul.f32 %v706, %v706
    %v709 = vmul.f32 %v707, %v707
    %v710 = vsel %vm248, %v708, 0.0
    %711 = vadd.xlane.f32.xlu0 %v710
    %v712 = vpop.xlane.xlu0 %711
    %v713 = vsel %vm248, %v709, 0.0
    %714 = vadd.xlane.f32.xlu0 %v713
    %v715 = vpop.xlane.xlu0 %714
    %v716 = vmul.f32 %v712, %v338
    %v717 = vmul.f32 %v715, %v338
    %v718 = vadd.f32 %v716, 1e-05
    %v719 = vadd.f32 %v717, 1e-05
    %v720 = vrsqrt.pop %v718
    %v721 = vrsqrt.pop %v719
    %v722 = vmul.f32 %v706, %v720
    %v723 = vmul.f32 %v707, %v721
    %v725 = vlaneseq
    %v726 = vshrl.u32 %v725, 7
    %v727 = vsub.s32 0, %v726
    %v728 = vrot.slane %v696, %v727
    %v730 = vmul.f32 %v722, %v728
    %v731 = vmul.f32 %v723, %v728
    %v733 = vlaneseq
    %v734 = vshrl.u32 %v733, 7
    %v735 = vsub.s32 0, %v734
    %v736 = vrot.slane %v697, %v735
    %v738 = vadd.f32 %v730, %v736
    %v739 = vadd.f32 %v731, %v736
    %v740 = vld [vmem:[#allocation14] sm:$0xff]
    %v741 = vld [vmem:[#allocation14 + $0x8] sm:$0xff]
    %v742 = vld [vmem:[#allocation14 + $0x10] sm:$0xff]
    %v743 = vld [vmem:[#allocation14 + $0x18] sm:$0xff]
    %v744 = vld [vmem:[#allocation16] sm:$0x1]
    %v746 = vlaneseq
    %v747 = vshrl.u32 %v746, 7
    %v748 = vsub.s32 0, %v747
    %v749 = vrot.slane %v744, %v748
    %v752 = vsel %vm248, %v738, 0
    %v755 = vsel %vm248, %v739, 0
    %757 = vmatprep.subr.mxu0 0.0
    %758 = vmatpush1.msra.mxu0 0.0
    %759 = vmatprep.subr.mxu0 0.0
    %760 = vmatpush1.msra.mxu0 0.0
    %761 = vmatprep.subr.mxu0 0.0
    %762 = vmatpush1.msra.mxu0 0.0
    %763 = vmatprep.subr.mxu0 0.0
    %764 = vmatpush1.msra.mxu0 0.0
    %765 = vmatprep.subr.mxu0 0.0
    %766 = vmatpush1.msra.mxu0 0.0
    %767 = vmatprep.subr.mxu0 0.0
    %768 = vmatpush1.msra.mxu0 0.0
    %769 = vmatprep.subr.mxu0 0.0
    %770 = vmatpush1.msra.mxu0 0.0
    %771 = vmatprep.subr.mxu0 0.0
    %772 = vmatpush1.msra.mxu0 0.0
    %773 = vmatprep.subr.mxu0 0.0
    %774 = vmatpush1.msra.mxu0 0.0
    %775 = vmatprep.subr.mxu0 0.0
    %776 = vmatpush1.msra.mxu0 0.0
    %777 = vmatprep.subr.mxu0 0.0
    %778 = vmatpush1.msra.mxu0 0.0
    %779 = vmatprep.subr.mxu0 0.0
    %780 = vmatpush1.msra.mxu0 0.0
    %781 = vmatprep.subr.mxu0 0.0
    %782 = vmatpush1.msra.mxu0 %v743
    %783 = vmatprep.subr.mxu0 0.0
    %784 = vmatpush1.msra.mxu0 %v742
    %785 = vmatprep.subr.mxu0 0.0
    %786 = vmatpush1.msra.mxu0 %v741
    %787 = vmatprep.subr.mxu0 0.0
    %788 = vmatpush1.msra.mxu0 %v740
    %789 = vmatprep.subr.mxu0 0.0
    %790 = vmatpush2.msra.mxu0 0.0
    %791 = vmatprep.subr.mxu0 0.0
    %792 = vmatpush2.msra.mxu0 0.0
    %793 = vmatprep.subr.mxu0 0.0
    %794 = vmatpush2.msra.mxu0 0.0
    %795 = vmatprep.subr.mxu0 0.0
    %796 = vmatpush2.msra.mxu0 0.0
    %797 = vmatprep.subr.mxu0 0.0
    %798 = vmatpush2.msra.mxu0 0.0
    %799 = vmatprep.subr.mxu0 0.0
    %800 = vmatpush2.msra.mxu0 0.0
    %801 = vmatprep.subr.mxu0 0.0
    %802 = vmatpush2.msra.mxu0 0.0
    %803 = vmatprep.subr.mxu0 0.0
    %804 = vmatpush2.msra.mxu0 0.0
    %805 = vmatprep.subr.mxu0 0.0
    %806 = vmatpush2.msra.mxu0 0.0
    %807 = vmatprep.subr.mxu0 0.0
    %808 = vmatpush2.msra.mxu0 0.0
    %809 = vmatprep.subr.mxu0 0.0
    %810 = vmatpush2.msra.mxu0 0.0
    %811 = vmatprep.subr.mxu0 0.0
    %812 = vmatpush2.msra.mxu0 0.0
    %813 = vmatprep.subr.mxu0 0.0
    %814 = vmatpush2.msra.mxu0 0.0
    %815 = vmatprep.subr.mxu0 0.0
    %816 = vmatpush2.msra.mxu0 0.0
    %817 = vmatprep.subr.mxu0 0.0
    %818 = vmatpush2.msra.mxu0 0.0
    %819 = vmatprep.subr.mxu0 0.0
    %820 = vmatpush2.msra.mxu0 0.0
    %821 = vmatprep.mubr.f32.mxu0 0.0
    %822 = vmatmul.mubr.f32.gmra.mxu0 %v752
    %v823 = vpop.f32.mrf.mxu0
    %v824 = vadd.f32 %v749, %v823
    %v825 = vpop.f32.mrf.mxu0
    %826 = vmatprep.mubr.f32.mxu0 0.0
    %827 = vmatmul.mubr.f32.gmra.mxu0 %v755
    %v828 = vpop.f32.mrf.mxu0
    %v829 = vadd.f32 %v749, %v828
    %v830 = vpop.f32.mrf.mxu0
    %831 = vdwg.mxu0
    %v832 = vmul.f32 %v824, %v824
    %v833 = vmul.f32 %v829, %v829
    %v834 = vmul.f32 %v824, %v832
    %v835 = vmul.f32 %v829, %v833
    %v836 = vmul.f32 %v834, 0.044715
    %v837 = vmul.f32 %v835, 0.044715
    %v838 = vadd.f32 %v824, %v836
    %v839 = vadd.f32 %v829, %v837
    %v840 = vmul.f32 %v838, 0.7978846
    %v841 = vmul.f32 %v839, 0.7978846
    %v842 = vtanh.pop %v840
    %v843 = vtanh.pop %v841
    %v844 = vadd.f32 %v842, 1.0
    %v845 = vadd.f32 %v843, 1.0
    %v846 = vmul.f32 %v844, 0.5
    %v847 = vmul.f32 %v845, 0.5
    %v848 = vmul.f32 %v824, %v846
    %v849 = vmul.f32 %v829, %v847
    %v850 = vld [vmem:[#allocation17] sm:$0xff]
    %v851 = vld [vmem:[#allocation17 + $0x8] sm:$0xff]
    %v852 = vld [vmem:[#allocation17 + $0x10] sm:$0xff]
    %v853 = vld [vmem:[#allocation17 + $0x18] sm:$0xff]
    %v854 = vld [vmem:[#allocation19] sm:$0x1]
    %v856 = vlaneseq
    %v857 = vshrl.u32 %v856, 7
    %v858 = vsub.s32 0, %v857
    %v859 = vrot.slane %v854, %v858
    %v862 = vsel %vm248, %v848, 0
    %v865 = vsel %vm248, %v849, 0
    %867 = vmatprep.subr.mxu0 0.0
    %868 = vmatpush1.msra.mxu0 0.0
    %869 = vmatprep.subr.mxu0 0.0
    %870 = vmatpush1.msra.mxu0 0.0
    %871 = vmatprep.subr.mxu0 0.0
    %872 = vmatpush1.msra.mxu0 0.0
    %873 = vmatprep.subr.mxu0 0.0
    %874 = vmatpush1.msra.mxu0 0.0
    %875 = vmatprep.subr.mxu0 0.0
    %876 = vmatpush1.msra.mxu0 0.0
    %877 = vmatprep.subr.mxu0 0.0
    %878 = vmatpush1.msra.mxu0 0.0
    %879 = vmatprep.subr.mxu0 0.0
    %880 = vmatpush1.msra.mxu0 0.0
    %881 = vmatprep.subr.mxu0 0.0
    %882 = vmatpush1.msra.mxu0 0.0
    %883 = vmatprep.subr.mxu0 0.0
    %884 = vmatpush1.msra.mxu0 0.0
    %885 = vmatprep.subr.mxu0 0.0
    %886 = vmatpush1.msra.mxu0 0.0
    %887 = vmatprep.subr.mxu0 0.0
    %888 = vmatpush1.msra.mxu0 0.0
    %889 = vmatprep.subr.mxu0 0.0
    %890 = vmatpush1.msra.mxu0 0.0
    %891 = vmatprep.subr.mxu0 0.0
    %892 = vmatpush1.msra.mxu0 %v853
    %893 = vmatprep.subr.mxu0 0.0
    %894 = vmatpush1.msra.mxu0 %v852
    %895 = vmatprep.subr.mxu0 0.0
    %896 = vmatpush1.msra.mxu0 %v851
    %897 = vmatprep.subr.mxu0 0.0
    %898 = vmatpush1.msra.mxu0 %v850
    %899 = vmatprep.subr.mxu0 0.0
    %900 = vmatpush2.msra.mxu0 0.0
    %901 = vmatprep.subr.mxu0 0.0
    %902 = vmatpush2.msra.mxu0 0.0
    %903 = vmatprep.subr.mxu0 0.0
    %904 = vmatpush2.msra.mxu0 0.0
    %905 = vmatprep.subr.mxu0 0.0
    %906 = vmatpush2.msra.mxu0 0.0
    %907 = vmatprep.subr.mxu0 0.0
    %908 = vmatpush2.msra.mxu0 0.0
    %909 = vmatprep.subr.mxu0 0.0
    %910 = vmatpush2.msra.mxu0 0.0
    %911 = vmatprep.subr.mxu0 0.0
    %912 = vmatpush2.msra.mxu0 0.0
    %913 = vmatprep.subr.mxu0 0.0
    %914 = vmatpush2.msra.mxu0 0.0
    %915 = vmatprep.subr.mxu0 0.0
    %916 = vmatpush2.msra.mxu0 0.0
    %917 = vmatprep.subr.mxu0 0.0
    %918 = vmatpush2.msra.mxu0 0.0
    %919 = vmatprep.subr.mxu0 0.0
    %920 = vmatpush2.msra.mxu0 0.0
    %921 = vmatprep.subr.mxu0 0.0
    %922 = vmatpush2.msra.mxu0 0.0
    %923 = vmatprep.subr.mxu0 0.0
    %924 = vmatpush2.msra.mxu0 0.0
    %925 = vmatprep.subr.mxu0 0.0
    %926 = vmatpush2.msra.mxu0 0.0
    %927 = vmatprep.subr.mxu0 0.0
    %928 = vmatpush2.msra.mxu0 0.0
    %929 = vmatprep.subr.mxu0 0.0
    %930 = vmatpush2.msra.mxu0 0.0
    %931 = vmatprep.mubr.f32.mxu0 0.0
    %932 = vmatmul.mubr.f32.gmra.mxu0 %v862
    %v933 = vpop.f32.mrf.mxu0
    %v934 = vadd.f32 %v859, %v933
    %v935 = vpop.f32.mrf.mxu0
    %936 = vmatprep.mubr.f32.mxu0 0.0
    %937 = vmatmul.mubr.f32.gmra.mxu0 %v865
    %v938 = vpop.f32.mrf.mxu0
    %v939 = vadd.f32 %v859, %v938
    %v940 = vpop.f32.mrf.mxu0
    %941 = vdwg.mxu0
    %v942 = vadd.f32 %v694, %v934
    %v943 = vadd.f32 %v695, %v939
    %s944 = scalar_lea.vmem [#allocation5], 1
    %v945 = vld [vmem:[%s944] sm:$0x1]
    %s946 = scalar_lea.vmem [#allocation7], 1
    %v947 = vld [vmem:[%s946] sm:$0x1]
    %v948 = vsel %vm248, %v942, 0.0
    %949 = vadd.xlane.f32.xlu0 %v948
    %v950 = vpop.xlane.xlu0 %949
    %v951 = vsel %vm248, %v943, 0.0
    %952 = vadd.xlane.f32.xlu0 %v951
    %v953 = vpop.xlane.xlu0 %952
    %v954 = vmul.f32 %v950, %v338
    %v955 = vmul.f32 %v953, %v338
    %v956 = vsub.f32 %v942, %v954
    %v957 = vsub.f32 %v943, %v955
    %v958 = vmul.f32 %v956, %v956
    %v959 = vmul.f32 %v957, %v957
    %v960 = vsel %vm248, %v958, 0.0
    %961 = vadd.xlane.f32.xlu0 %v960
    %v962 = vpop.xlane.xlu0 %961
    %v963 = vsel %vm248, %v959, 0.0
    %964 = vadd.xlane.f32.xlu0 %v963
    %v965 = vpop.xlane.xlu0 %964
    %v966 = vmul.f32 %v962, %v338
    %v967 = vmul.f32 %v965, %v338
    %v968 = vadd.f32 %v966, 1e-05
    %v969 = vadd.f32 %v967, 1e-05
    %v970 = vrsqrt.pop %v968
    %v971 = vrsqrt.pop %v969
    %v972 = vmul.f32 %v956, %v970
    %v973 = vmul.f32 %v957, %v971
    %v975 = vlaneseq
    %v976 = vshrl.u32 %v975, 7
    %v977 = vsub.s32 0, %v976
    %v978 = vrot.slane %v945, %v977
    %v980 = vmul.f32 %v972, %v978
    %v981 = vmul.f32 %v973, %v978
    %v983 = vlaneseq
    %v984 = vshrl.u32 %v983, 7
    %v985 = vsub.s32 0, %v984
    %v986 = vrot.slane %v947, %v985
    %v988 = vadd.f32 %v980, %v986
    %v989 = vadd.f32 %v981, %v986
    %s990 = scalar_lea.vmem [#allocation8], 8
    %v991 = vld [vmem:[%s990] sm:$0xff]
    %s992 = scalar_lea.vmem [#allocation10], 8
    %v993 = vld [vmem:[%s992] sm:$0xff]
    %s994 = scalar_lea.vmem %s6, 8
    %v995 = vld [vmem:[%s994] sm:$0xff]
    %997 = vset.pattern.permute.xlu0 0
    %998 = vperm.xlu0 %997, %v995
    %v999 = vpop.permute.xlu0 %998
    %v1002 = vsel %vm383, %v991, 0
    %1004 = vmatprep.subr.mxu0 0.0
    %1005 = vmatpush1.msra.mxu0 0.0
    %1006 = vmatprep.subr.mxu0 0.0
    %1007 = vmatpush1.msra.mxu0 0.0
    %1008 = vmatprep.subr.mxu0 0.0
    %1009 = vmatpush1.msra.mxu0 0.0
    %1010 = vmatprep.subr.mxu0 0.0
    %1011 = vmatpush1.msra.mxu0 0.0
    %1012 = vmatprep.subr.mxu0 0.0
    %1013 = vmatpush1.msra.mxu0 0.0
    %1014 = vmatprep.subr.mxu0 0.0
    %1015 = vmatpush1.msra.mxu0 0.0
    %1016 = vmatprep.subr.mxu0 0.0
    %1017 = vmatpush1.msra.mxu0 0.0
    %1018 = vmatprep.subr.mxu0 0.0
    %1019 = vmatpush1.msra.mxu0 0.0
    %1020 = vmatprep.subr.mxu0 0.0
    %1021 = vmatpush1.msra.mxu0 0.0
    %1022 = vmatprep.subr.mxu0 0.0
    %1023 = vmatpush1.msra.mxu0 0.0
    %1024 = vmatprep.subr.mxu0 0.0
    %1025 = vmatpush1.msra.mxu0 0.0
    %1026 = vmatprep.subr.mxu0 0.0
    %1027 = vmatpush1.msra.mxu0 0.0
    %1028 = vmatprep.subr.mxu0 0.0
    %1029 = vmatpush1.msra.mxu0 0.0
    %1030 = vmatprep.subr.mxu0 0.0
    %1031 = vmatpush1.msra.mxu0 0.0
    %1032 = vmatprep.subr.mxu0 0.0
    %1033 = vmatpush1.msra.mxu0 0.0
    %1034 = vmatprep.subr.mxu0 0.0
    %1035 = vmatpush1.msra.mxu0 %v988
    %1036 = vmatprep.subr.mxu0 0.0
    %1037 = vmatpush2.msra.mxu0 0.0
    %1038 = vmatprep.subr.mxu0 0.0
    %1039 = vmatpush2.msra.mxu0 0.0
    %1040 = vmatprep.subr.mxu0 0.0
    %1041 = vmatpush2.msra.mxu0 0.0
    %1042 = vmatprep.subr.mxu0 0.0
    %1043 = vmatpush2.msra.mxu0 0.0
    %1044 = vmatprep.subr.mxu0 0.0
    %1045 = vmatpush2.msra.mxu0 0.0
    %1046 = vmatprep.subr.mxu0 0.0
    %1047 = vmatpush2.msra.mxu0 0.0
    %1048 = vmatprep.subr.mxu0 0.0
    %1049 = vmatpush2.msra.mxu0 0.0
    %1050 = vmatprep.subr.mxu0 0.0
    %1051 = vmatpush2.msra.mxu0 0.0
    %1052 = vmatprep.subr.mxu0 0.0
    %1053 = vmatpush2.msra.mxu0 0.0
    %1054 = vmatprep.subr.mxu0 0.0
    %1055 = vmatpush2.msra.mxu0 0.0
    %1056 = vmatprep.subr.mxu0 0.0
    %1057 = vmatpush2.msra.mxu0 0.0
    %1058 = vmatprep.subr.mxu0 0.0
    %1059 = vmatpush2.msra.mxu0 0.0
    %1060 = vmatprep.subr.mxu0 0.0
    %1061 = vmatpush2.msra.mxu0 0.0
    %1062 = vmatprep.subr.mxu0 0.0
    %1063 = vmatpush2.msra.mxu0 0.0
    %1064 = vmatprep.subr.mxu0 0.0
    %1065 = vmatpush2.msra.mxu0 0.0
    %1066 = vmatprep.subr.mxu0 0.0
    %1067 = vmatpush2.msra.mxu0 0.0
    %1068 = vmatprep.mubr.f32.mxu0 0.0
    %1069 = vmatmul.mubr.f32.gmra.mxu0 %v1002
    %v1070 = vpop.f32.mrf.mxu0
    %v1071 = vadd.f32 %v999, %v1070
    %v1072 = vpop.f32.mrf.mxu0
    %1073 = vdwg.mxu0
    %1074 = vmatprep.subr.mxu0 0.0
    %1075 = vmatpush1.msra.mxu0 0.0
    %1076 = vmatprep.subr.mxu0 0.0
    %1077 = vmatpush1.msra.mxu0 0.0
    %1078 = vmatprep.subr.mxu0 0.0
    %1079 = vmatpush1.msra.mxu0 0.0
    %1080 = vmatprep.subr.mxu0 0.0
    %1081 = vmatpush1.msra.mxu0 0.0
    %1082 = vmatprep.subr.mxu0 0.0
    %1083 = vmatpush1.msra.mxu0 0.0
    %1084 = vmatprep.subr.mxu0 0.0
    %1085 = vmatpush1.msra.mxu0 0.0
    %1086 = vmatprep.subr.mxu0 0.0
    %1087 = vmatpush1.msra.mxu0 0.0
    %1088 = vmatprep.subr.mxu0 0.0
    %1089 = vmatpush1.msra.mxu0 0.0
    %1090 = vmatprep.subr.mxu0 0.0
    %1091 = vmatpush1.msra.mxu0 0.0
    %1092 = vmatprep.subr.mxu0 0.0
    %1093 = vmatpush1.msra.mxu0 0.0
    %1094 = vmatprep.subr.mxu0 0.0
    %1095 = vmatpush1.msra.mxu0 0.0
    %1096 = vmatprep.subr.mxu0 0.0
    %1097 = vmatpush1.msra.mxu0 0.0
    %1098 = vmatprep.subr.mxu0 0.0
    %1099 = vmatpush1.msra.mxu0 0.0
    %1100 = vmatprep.subr.mxu0 0.0
    %1101 = vmatpush1.msra.mxu0 0.0
    %1102 = vmatprep.subr.mxu0 0.0
    %1103 = vmatpush1.msra.mxu0 0.0
    %1104 = vmatprep.subr.mxu0 0.0
    %1105 = vmatpush1.msra.mxu0 %v989
    %1106 = vmatprep.subr.mxu0 0.0
    %1107 = vmatpush2.msra.mxu0 0.0
    %1108 = vmatprep.subr.mxu0 0.0
    %1109 = vmatpush2.msra.mxu0 0.0
    %1110 = vmatprep.subr.mxu0 0.0
    %1111 = vmatpush2.msra.mxu0 0.0
    %1112 = vmatprep.subr.mxu0 0.0
    %1113 = vmatpush2.msra.mxu0 0.0
    %1114 = vmatprep.subr.mxu0 0.0
    %1115 = vmatpush2.msra.mxu0 0.0
    %1116 = vmatprep.subr.mxu0 0.0
    %1117 = vmatpush2.msra.mxu0 0.0
    %1118 = vmatprep.subr.mxu0 0.0
    %1119 = vmatpush2.msra.mxu0 0.0
    %1120 = vmatprep.subr.mxu0 0.0
    %1121 = vmatpush2.msra.mxu0 0.0
    %1122 = vmatprep.subr.mxu0 0.0
    %1123 = vmatpush2.msra.mxu0 0.0
    %1124 = vmatprep.subr.mxu0 0.0
    %1125 = vmatpush2.msra.mxu0 0.0
    %1126 = vmatprep.subr.mxu0 0.0
    %1127 = vmatpush2.msra.mxu0 0.0
    %1128 = vmatprep.subr.mxu0 0.0
    %1129 = vmatpush2.msra.mxu0 0.0
    %1130 = vmatprep.subr.mxu0 0.0
    %1131 = vmatpush2.msra.mxu0 0.0
    %1132 = vmatprep.subr.mxu0 0.0
    %1133 = vmatpush2.msra.mxu0 0.0
    %1134 = vmatprep.subr.mxu0 0.0
    %1135 = vmatpush2.msra.mxu0 0.0
    %1136 = vmatprep.subr.mxu0 0.0
    %1137 = vmatpush2.msra.mxu0 0.0
    %1138 = vmatprep.mubr.f32.mxu0 0.0
    %1139 = vmatmul.mubr.f32.gmra.mxu0 %v1002
    %v1140 = vpop.f32.mrf.mxu0
    %v1141 = vadd.f32 %v999, %v1140
    %v1142 = vpop.f32.mrf.mxu0
    %1143 = vdwg.mxu0
    %v1144 = vmul.f32 %v1071, %v1071
    %v1145 = vmul.f32 %v1141, %v1141
    %v1146 = vmul.f32 %v1071, %v1144
    %v1147 = vmul.f32 %v1141, %v1145
    %v1148 = vmul.f32 %v1146, 0.044715
    %v1149 = vmul.f32 %v1147, 0.044715
    %v1150 = vadd.f32 %v1071, %v1148
    %v1151 = vadd.f32 %v1141, %v1149
    %v1152 = vmul.f32 %v1150, 0.7978846
    %v1153 = vmul.f32 %v1151, 0.7978846
    %v1154 = vtanh.pop %v1152
    %v1155 = vtanh.pop %v1153
    %v1156 = vadd.f32 %v1154, 1.0
    %v1157 = vadd.f32 %v1155, 1.0
    %v1158 = vmul.f32 %v1156, 0.5
    %v1159 = vmul.f32 %v1157, 0.5
    %v1160 = vmul.f32 %v1071, %v1158
    %v1161 = vmul.f32 %v1141, %v1159
    %s1162 = scalar_lea.vmem %s8, 8
    %v1163 = vld [vmem:[%s1162] sm:$0xff]
    %1165 = vset.pattern.permute.xlu0 0
    %1166 = vperm.xlu0 %1165, %v1163
    %v1167 = vpop.permute.xlu0 %1166
    %v1170 = vsel %vm383, %v993, 0
    %1172 = vmatprep.subr.mxu0 0.0
    %1173 = vmatpush1.msra.mxu0 0.0
    %1174 = vmatprep.subr.mxu0 0.0
    %1175 = vmatpush1.msra.mxu0 0.0
    %1176 = vmatprep.subr.mxu0 0.0
    %1177 = vmatpush1.msra.mxu0 0.0
    %1178 = vmatprep.subr.mxu0 0.0
    %1179 = vmatpush1.msra.mxu0 0.0
    %1180 = vmatprep.subr.mxu0 0.0
    %1181 = vmatpush1.msra.mxu0 0.0
    %1182 = vmatprep.subr.mxu0 0.0
    %1183 = vmatpush1.msra.mxu0 0.0
    %1184 = vmatprep.subr.mxu0 0.0
    %1185 = vmatpush1.msra.mxu0 0.0
    %1186 = vmatprep.subr.mxu0 0.0
    %1187 = vmatpush1.msra.mxu0 0.0
    %1188 = vmatprep.subr.mxu0 0.0
    %1189 = vmatpush1.msra.mxu0 0.0
    %1190 = vmatprep.subr.mxu0 0.0
    %1191 = vmatpush1.msra.mxu0 0.0
    %1192 = vmatprep.subr.mxu0 0.0
    %1193 = vmatpush1.msra.mxu0 0.0
    %1194 = vmatprep.subr.mxu0 0.0
    %1195 = vmatpush1.msra.mxu0 0.0
    %1196 = vmatprep.subr.mxu0 0.0
    %1197 = vmatpush1.msra.mxu0 0.0
    %1198 = vmatprep.subr.mxu0 0.0
    %1199 = vmatpush1.msra.mxu0 0.0
    %1200 = vmatprep.subr.mxu0 0.0
    %1201 = vmatpush1.msra.mxu0 0.0
    %1202 = vmatprep.subr.mxu0 0.0
    %1203 = vmatpush1.msra.mxu0 %v1160
    %1204 = vmatprep.subr.mxu0 0.0
    %1205 = vmatpush2.msra.mxu0 0.0
    %1206 = vmatprep.subr.mxu0 0.0
    %1207 = vmatpush2.msra.mxu0 0.0
    %1208 = vmatprep.subr.mxu0 0.0
    %1209 = vmatpush2.msra.mxu0 0.0
    %1210 = vmatprep.subr.mxu0 0.0
    %1211 = vmatpush2.msra.mxu0 0.0
    %1212 = vmatprep.subr.mxu0 0.0
    %1213 = vmatpush2.msra.mxu0 0.0
    %1214 = vmatprep.subr.mxu0 0.0
    %1215 = vmatpush2.msra.mxu0 0.0
    %1216 = vmatprep.subr.mxu0 0.0
    %1217 = vmatpush2.msra.mxu0 0.0
    %1218 = vmatprep.subr.mxu0 0.0
    %1219 = vmatpush2.msra.mxu0 0.0
    %1220 = vmatprep.subr.mxu0 0.0
    %1221 = vmatpush2.msra.mxu0 0.0
    %1222 = vmatprep.subr.mxu0 0.0
    %1223 = vmatpush2.msra.mxu0 0.0
    %1224 = vmatprep.subr.mxu0 0.0
    %1225 = vmatpush2.msra.mxu0 0.0
    %1226 = vmatprep.subr.mxu0 0.0
    %1227 = vmatpush2.msra.mxu0 0.0
    %1228 = vmatprep.subr.mxu0 0.0
    %1229 = vmatpush2.msra.mxu0 0.0
    %1230 = vmatprep.subr.mxu0 0.0
    %1231 = vmatpush2.msra.mxu0 0.0
    %1232 = vmatprep.subr.mxu0 0.0
    %1233 = vmatpush2.msra.mxu0 0.0
    %1234 = vmatprep.subr.mxu0 0.0
    %1235 = vmatpush2.msra.mxu0 0.0
    %1236 = vmatprep.mubr.f32.mxu0 0.0
    %1237 = vmatmul.mubr.f32.gmra.mxu0 %v1170
    %v1238 = vpop.f32.mrf.mxu0
    %v1239 = vadd.f32 %v1167, %v1238
    %v1240 = vpop.f32.mrf.mxu0
    %1241 = vdwg.mxu0
    %1242 = vmatprep.subr.mxu0 0.0
    %1243 = vmatpush1.msra.mxu0 0.0
    %1244 = vmatprep.subr.mxu0 0.0
    %1245 = vmatpush1.msra.mxu0 0.0
    %1246 = vmatprep.subr.mxu0 0.0
    %1247 = vmatpush1.msra.mxu0 0.0
    %1248 = vmatprep.subr.mxu0 0.0
    %1249 = vmatpush1.msra.mxu0 0.0
    %1250 = vmatprep.subr.mxu0 0.0
    %1251 = vmatpush1.msra.mxu0 0.0
    %1252 = vmatprep.subr.mxu0 0.0
    %1253 = vmatpush1.msra.mxu0 0.0
    %1254 = vmatprep.subr.mxu0 0.0
    %1255 = vmatpush1.msra.mxu0 0.0
    %1256 = vmatprep.subr.mxu0 0.0
    %1257 = vmatpush1.msra.mxu0 0.0
    %1258 = vmatprep.subr.mxu0 0.0
    %1259 = vmatpush1.msra.mxu0 0.0
    %1260 = vmatprep.subr.mxu0 0.0
    %1261 = vmatpush1.msra.mxu0 0.0
    %1262 = vmatprep.subr.mxu0 0.0
    %1263 = vmatpush1.msra.mxu0 0.0
    %1264 = vmatprep.subr.mxu0 0.0
    %1265 = vmatpush1.msra.mxu0 0.0
    %1266 = vmatprep.subr.mxu0 0.0
    %1267 = vmatpush1.msra.mxu0 0.0
    %1268 = vmatprep.subr.mxu0 0.0
    %1269 = vmatpush1.msra.mxu0 0.0
    %1270 = vmatprep.subr.mxu0 0.0
    %1271 = vmatpush1.msra.mxu0 0.0
    %1272 = vmatprep.subr.mxu0 0.0
    %1273 = vmatpush1.msra.mxu0 %v1161
    %1274 = vmatprep.subr.mxu0 0.0
    %1275 = vmatpush2.msra.mxu0 0.0
    %1276 = vmatprep.subr.mxu0 0.0
    %1277 = vmatpush2.msra.mxu0 0.0
    %1278 = vmatprep.subr.mxu0 0.0
    %1279 = vmatpush2.msra.mxu0 0.0
    %1280 = vmatprep.subr.mxu0 0.0
    %1281 = vmatpush2.msra.mxu0 0.0
    %1282 = vmatprep.subr.mxu0 0.0
    %1283 = vmatpush2.msra.mxu0 0.0
    %1284 = vmatprep.subr.mxu0 0.0
    %1285 = vmatpush2.msra.mxu0 0.0
    %1286 = vmatprep.subr.mxu0 0.0
    %1287 = vmatpush2.msra.mxu0 0.0
    %1288 = vmatprep.subr.mxu0 0.0
    %1289 = vmatpush2.msra.mxu0 0.0
    %1290 = vmatprep.subr.mxu0 0.0
    %1291 = vmatpush2.msra.mxu0 0.0
    %1292 = vmatprep.subr.mxu0 0.0
    %1293 = vmatpush2.msra.mxu0 0.0
    %1294 = vmatprep.subr.mxu0 0.0
    %1295 = vmatpush2.msra.mxu0 0.0
    %1296 = vmatprep.subr.mxu0 0.0
    %1297 = vmatpush2.msra.mxu0 0.0
    %1298 = vmatprep.subr.mxu0 0.0
    %1299 = vmatpush2.msra.mxu0 0.0
    %1300 = vmatprep.subr.mxu0 0.0
    %1301 = vmatpush2.msra.mxu0 0.0
    %1302 = vmatprep.subr.mxu0 0.0
    %1303 = vmatpush2.msra.mxu0 0.0
    %1304 = vmatprep.subr.mxu0 0.0
    %1305 = vmatpush2.msra.mxu0 0.0
    %1306 = vmatprep.mubr.f32.mxu0 0.0
    %1307 = vmatmul.mubr.f32.gmra.mxu0 %v1170
    %v1308 = vpop.f32.mrf.mxu0
    %v1309 = vadd.f32 %v1167, %v1308
    %v1310 = vpop.f32.mrf.mxu0
    %1311 = vdwg.mxu0
    %v1312 = vadd.f32 %v942, %v1239
    %v1313 = vadd.f32 %v943, %v1309
    %s1314 = scalar_lea.vmem [#allocation11], 1
    %v1315 = vld [vmem:[%s1314] sm:$0x1]
    %s1316 = scalar_lea.vmem [#allocation13], 1
    %v1317 = vld [vmem:[%s1316] sm:$0x1]
    %v1318 = vsel %vm248, %v1312, 0.0
    %1319 = vadd.xlane.f32.xlu0 %v1318
    %v1320 = vpop.xlane.xlu0 %1319
    %v1321 = vsel %vm248, %v1313, 0.0
    %1322 = vadd.xlane.f32.xlu0 %v1321
    %v1323 = vpop.xlane.xlu0 %1322
    %v1324 = vmul.f32 %v1320, %v338
    %v1325 = vmul.f32 %v1323, %v338
    %v1326 = vsub.f32 %v1312, %v1324
    %v1327 = vsub.f32 %v1313, %v1325
    %v1328 = vmul.f32 %v1326, %v1326
    %v1329 = vmul.f32 %v1327, %v1327
    %v1330 = vsel %vm248, %v1328, 0.0
    %1331 = vadd.xlane.f32.xlu0 %v1330
    %v1332 = vpop.xlane.xlu0 %1331
    %v1333 = vsel %vm248, %v1329, 0.0
    %1334 = vadd.xlane.f32.xlu0 %v1333
    %v1335 = vpop.xlane.xlu0 %1334
    %v1336 = vmul.f32 %v1332, %v338
    %v1337 = vmul.f32 %v1335, %v338
    %v1338 = vadd.f32 %v1336, 1e-05
    %v1339 = vadd.f32 %v1337, 1e-05
    %v1340 = vrsqrt.pop %v1338
    %v1341 = vrsqrt.pop %v1339
    %v1342 = vmul.f32 %v1326, %v1340
    %v1343 = vmul.f32 %v1327, %v1341
    %v1345 = vlaneseq
    %v1346 = vshrl.u32 %v1345, 7
    %v1347 = vsub.s32 0, %v1346
    %v1348 = vrot.slane %v1315, %v1347
    %v1350 = vmul.f32 %v1342, %v1348
    %v1351 = vmul.f32 %v1343, %v1348
    %v1353 = vlaneseq
    %v1354 = vshrl.u32 %v1353, 7
    %v1355 = vsub.s32 0, %v1354
    %v1356 = vrot.slane %v1317, %v1355
    %v1358 = vadd.f32 %v1350, %v1356
    %v1359 = vadd.f32 %v1351, %v1356
    %s1360 = scalar_lea.vmem [#allocation14], 32
    %v1361 = vld [vmem:[%s1360] sm:$0xff]
    %v1362 = vld [vmem:[%s1360 + $0x8] sm:$0xff]
    %v1363 = vld [vmem:[%s1360 + $0x10] sm:$0xff]
    %v1364 = vld [vmem:[%s1360 + $0x18] sm:$0xff]
    %s1365 = scalar_lea.vmem [#allocation16], 1
    %v1366 = vld [vmem:[%s1365] sm:$0x1]
    %v1368 = vlaneseq
    %v1369 = vshrl.u32 %v1368, 7
    %v1370 = vsub.s32 0, %v1369
    %v1371 = vrot.slane %v1366, %v1370
    %v1374 = vsel %vm248, %v1358, 0
    %v1377 = vsel %vm248, %v1359, 0
    %1379 = vmatprep.subr.mxu0 0.0
    %1380 = vmatpush1.msra.mxu0 0.0
    %1381 = vmatprep.subr.mxu0 0.0
    %1382 = vmatpush1.msra.mxu0 0.0
    %1383 = vmatprep.subr.mxu0 0.0
    %1384 = vmatpush1.msra.mxu0 0.0
    %1385 = vmatprep.subr.mxu0 0.0
    %1386 = vmatpush1.msra.mxu0 0.0
    %1387 = vmatprep.subr.mxu0 0.0
    %1388 = vmatpush1.msra.mxu0 0.0
    %1389 = vmatprep.subr.mxu0 0.0
    %1390 = vmatpush1.msra.mxu0 0.0
    %1391 = vmatprep.subr.mxu0 0.0
    %1392 = vmatpush1.msra.mxu0 0.0
    %1393 = vmatprep.subr.mxu0 0.0
    %1394 = vmatpush1.msra.mxu0 0.0
    %1395 = vmatprep.subr.mxu0 0.0
    %1396 = vmatpush1.msra.mxu0 0.0
    %1397 = vmatprep.subr.mxu0 0.0
    %1398 = vmatpush1.msra.mxu0 0.0
    %1399 = vmatprep.subr.mxu0 0.0
    %1400 = vmatpush1.msra.mxu0 0.0
    %1401 = vmatprep.subr.mxu0 0.0
    %1402 = vmatpush1.msra.mxu0 0.0
    %1403 = vmatprep.subr.mxu0 0.0
    %1404 = vmatpush1.msra.mxu0 %v1364
    %1405 = vmatprep.subr.mxu0 0.0
    %1406 = vmatpush1.msra.mxu0 %v1363
    %1407 = vmatprep.subr.mxu0 0.0
    %1408 = vmatpush1.msra.mxu0 %v1362
    %1409 = vmatprep.subr.mxu0 0.0
    %1410 = vmatpush1.msra.mxu0 %v1361
    %1411 = vmatprep.subr.mxu0 0.0
    %1412 = vmatpush2.msra.mxu0 0.0
    %1413 = vmatprep.subr.mxu0 0.0
    %1414 = vmatpush2.msra.mxu0 0.0
    %1415 = vmatprep.subr.mxu0 0.0
    %1416 = vmatpush2.msra.mxu0 0.0
    %1417 = vmatprep.subr.mxu0 0.0
    %1418 = vmatpush2.msra.mxu0 0.0
    %1419 = vmatprep.subr.mxu0 0.0
    %1420 = vmatpush2.msra.mxu0 0.0
    %1421 = vmatprep.subr.mxu0 0.0
    %1422 = vmatpush2.msra.mxu0 0.0
    %1423 = vmatprep.subr.mxu0 0.0
    %1424 = vmatpush2.msra.mxu0 0.0
    %1425 = vmatprep.subr.mxu0 0.0
    %1426 = vmatpush2.msra.mxu0 0.0
    %1427 = vmatprep.subr.mxu0 0.0
    %1428 = vmatpush2.msra.mxu0 0.0
    %1429 = vmatprep.subr.mxu0 0.0
    %1430 = vmatpush2.msra.mxu0 0.0
    %1431 = vmatprep.subr.mxu0 0.0
    %1432 = vmatpush2.msra.mxu0 0.0
    %1433 = vmatprep.subr.mxu0 0.0
    %1434 = vmatpush2.msra.mxu0 0.0
    %1435 = vmatprep.subr.mxu0 0.0
    %1436 = vmatpush2.msra.mxu0 0.0
    %1437 = vmatprep.subr.mxu0 0.0
    %1438 = vmatpush2.msra.mxu0 0.0
    %1439 = vmatprep.subr.mxu0 0.0
    %1440 = vmatpush2.msra.mxu0 0.0
    %1441 = vmatprep.subr.mxu0 0.0
    %1442 = vmatpush2.msra.mxu0 0.0
    %1443 = vmatprep.mubr.f32.mxu0 0.0
    %1444 = vmatmul.mubr.f32.gmra.mxu0 %v1374
    %v1445 = vpop.f32.mrf.mxu0
    %v1446 = vadd.f32 %v1371, %v1445
    %v1447 = vpop.f32.mrf.mxu0
    %1448 = vmatprep.mubr.f32.mxu0 0.0
    %1449 = vmatmul.mubr.f32.gmra.mxu0 %v1377
    %v1450 = vpop.f32.mrf.mxu0
    %v1451 = vadd.f32 %v1371, %v1450
    %v1452 = vpop.f32.mrf.mxu0
    %1453 = vdwg.mxu0
    %v1454 = vmul.f32 %v1446, %v1446
    %v1455 = vmul.f32 %v1451, %v1451
    %v1456 = vmul.f32 %v1446, %v1454
    %v1457 = vmul.f32 %v1451, %v1455
    %v1458 = vmul.f32 %v1456, 0.044715
    %v1459 = vmul.f32 %v1457, 0.044715
    %v1460 = vadd.f32 %v1446, %v1458
    %v1461 = vadd.f32 %v1451, %v1459
    %v1462 = vmul.f32 %v1460, 0.7978846
    %v1463 = vmul.f32 %v1461, 0.7978846
    %v1464 = vtanh.pop %v1462
    %v1465 = vtanh.pop %v1463
    %v1466 = vadd.f32 %v1464, 1.0
    %v1467 = vadd.f32 %v1465, 1.0
    %v1468 = vmul.f32 %v1466, 0.5
    %v1469 = vmul.f32 %v1467, 0.5
    %v1470 = vmul.f32 %v1446, %v1468
    %v1471 = vmul.f32 %v1451, %v1469
    %s1472 = scalar_lea.vmem [#allocation17], 32
    %v1473 = vld [vmem:[%s1472] sm:$0xff]
    %v1474 = vld [vmem:[%s1472 + $0x8] sm:$0xff]
    %v1475 = vld [vmem:[%s1472 + $0x10] sm:$0xff]
    %v1476 = vld [vmem:[%s1472 + $0x18] sm:$0xff]
    %s1477 = scalar_lea.vmem [#allocation19], 1
    %v1478 = vld [vmem:[%s1477] sm:$0x1]
    %v1480 = vlaneseq
    %v1481 = vshrl.u32 %v1480, 7
    %v1482 = vsub.s32 0, %v1481
    %v1483 = vrot.slane %v1478, %v1482
    %v1486 = vsel %vm248, %v1470, 0
    %v1489 = vsel %vm248, %v1471, 0
    %1491 = vmatprep.subr.mxu0 0.0
    %1492 = vmatpush1.msra.mxu0 0.0
    %1493 = vmatprep.subr.mxu0 0.0
    %1494 = vmatpush1.msra.mxu0 0.0
    %1495 = vmatprep.subr.mxu0 0.0
    %1496 = vmatpush1.msra.mxu0 0.0
    %1497 = vmatprep.subr.mxu0 0.0
    %1498 = vmatpush1.msra.mxu0 0.0
    %1499 = vmatprep.subr.mxu0 0.0
    %1500 = vmatpush1.msra.mxu0 0.0
    %1501 = vmatprep.subr.mxu0 0.0
    %1502 = vmatpush1.msra.mxu0 0.0
    %1503 = vmatprep.subr.mxu0 0.0
    %1504 = vmatpush1.msra.mxu0 0.0
    %1505 = vmatprep.subr.mxu0 0.0
    %1506 = vmatpush1.msra.mxu0 0.0
    %1507 = vmatprep.subr.mxu0 0.0
    %1508 = vmatpush1.msra.mxu0 0.0
    %1509 = vmatprep.subr.mxu0 0.0
    %1510 = vmatpush1.msra.mxu0 0.0
    %1511 = vmatprep.subr.mxu0 0.0
    %1512 = vmatpush1.msra.mxu0 0.0
    %1513 = vmatprep.subr.mxu0 0.0
    %1514 = vmatpush1.msra.mxu0 0.0
    %1515 = vmatprep.subr.mxu0 0.0
    %1516 = vmatpush1.msra.mxu0 %v1476
    %1517 = vmatprep.subr.mxu0 0.0
    %1518 = vmatpush1.msra.mxu0 %v1475
    %1519 = vmatprep.subr.mxu0 0.0
    %1520 = vmatpush1.msra.mxu0 %v1474
    %1521 = vmatprep.subr.mxu0 0.0
    %1522 = vmatpush1.msra.mxu0 %v1473
    %1523 = vmatprep.subr.mxu0 0.0
    %1524 = vmatpush2.msra.mxu0 0.0
    %1525 = vmatprep.subr.mxu0 0.0
    %1526 = vmatpush2.msra.mxu0 0.0
    %1527 = vmatprep.subr.mxu0 0.0
    %1528 = vmatpush2.msra.mxu0 0.0
    %1529 = vmatprep.subr.mxu0 0.0
    %1530 = vmatpush2.msra.mxu0 0.0
    %1531 = vmatprep.subr.mxu0 0.0
    %1532 = vmatpush2.msra.mxu0 0.0
    %1533 = vmatprep.subr.mxu0 0.0
    %1534 = vmatpush2.msra.mxu0 0.0
    %1535 = vmatprep.subr.mxu0 0.0
    %1536 = vmatpush2.msra.mxu0 0.0
    %1537 = vmatprep.subr.mxu0 0.0
    %1538 = vmatpush2.msra.mxu0 0.0
    %1539 = vmatprep.subr.mxu0 0.0
    %1540 = vmatpush2.msra.mxu0 0.0
    %1541 = vmatprep.subr.mxu0 0.0
    %1542 = vmatpush2.msra.mxu0 0.0
    %1543 = vmatprep.subr.mxu0 0.0
    %1544 = vmatpush2.msra.mxu0 0.0
    %1545 = vmatprep.subr.mxu0 0.0
    %1546 = vmatpush2.msra.mxu0 0.0
    %1547 = vmatprep.subr.mxu0 0.0
    %1548 = vmatpush2.msra.mxu0 0.0
    %1549 = vmatprep.subr.mxu0 0.0
    %1550 = vmatpush2.msra.mxu0 0.0
    %1551 = vmatprep.subr.mxu0 0.0
    %1552 = vmatpush2.msra.mxu0 0.0
    %1553 = vmatprep.subr.mxu0 0.0
    %1554 = vmatpush2.msra.mxu0 0.0
    %1555 = vmatprep.mubr.f32.mxu0 0.0
    %1556 = vmatmul.mubr.f32.gmra.mxu0 %v1486
    %v1557 = vpop.f32.mrf.mxu0
    %v1558 = vadd.f32 %v1483, %v1557
    %v1559 = vpop.f32.mrf.mxu0
    %1560 = vmatprep.mubr.f32.mxu0 0.0
    %1561 = vmatmul.mubr.f32.gmra.mxu0 %v1489
    %v1562 = vpop.f32.mrf.mxu0
    %v1563 = vadd.f32 %v1483, %v1562
    %v1564 = vpop.f32.mrf.mxu0
    %1565 = vdwg.mxu0
    %v1566 = vadd.f32 %v1312, %v1558
    %v1567 = vadd.f32 %v1313, %v1563
    %v1568 = vld [vmem:[#allocation20] sm:$0x1]
    %v1569 = vld [vmem:[#allocation22] sm:$0x1]
    %v1570 = vsel %vm248, %v1566, 0.0
    %1571 = vadd.xlane.f32.xlu0 %v1570
    %v1572 = vpop.xlane.xlu0 %1571
    %v1573 = vsel %vm248, %v1567, 0.0
    %1574 = vadd.xlane.f32.xlu0 %v1573
    %v1575 = vpop.xlane.xlu0 %1574
    %v1576 = vmul.f32 %v1572, %v338
    %v1577 = vmul.f32 %v1575, %v338
    %v1578 = vsub.f32 %v1566, %v1576
    %v1579 = vsub.f32 %v1567, %v1577
    %v1580 = vmul.f32 %v1578, %v1578
    %v1581 = vmul.f32 %v1579, %v1579
    %v1582 = vsel %vm248, %v1580, 0.0
    %1583 = vadd.xlane.f32.xlu0 %v1582
    %v1584 = vpop.xlane.xlu0 %1583
    %v1585 = vsel %vm248, %v1581, 0.0
    %1586 = vadd.xlane.f32.xlu0 %v1585
    %v1587 = vpop.xlane.xlu0 %1586
    %v1588 = vmul.f32 %v1584, %v338
    %v1589 = vmul.f32 %v1587, %v338
    %v1590 = vadd.f32 %v1588, 1e-05
    %v1591 = vadd.f32 %v1589, 1e-05
    %v1592 = vrsqrt.pop %v1590
    %v1593 = vrsqrt.pop %v1591
    %v1594 = vmul.f32 %v1578, %v1592
    %v1595 = vmul.f32 %v1579, %v1593
    %v1597 = vlaneseq
    %v1598 = vshrl.u32 %v1597, 7
    %v1599 = vsub.s32 0, %v1598
    %v1600 = vrot.slane %v1568, %v1599
    %v1602 = vmul.f32 %v1594, %v1600
    %v1603 = vmul.f32 %v1595, %v1600
    %v1605 = vlaneseq
    %v1606 = vshrl.u32 %v1605, 7
    %v1607 = vsub.s32 0, %v1606
    %v1608 = vrot.slane %v1569, %v1607
    %v1610 = vadd.f32 %v1602, %v1608
    %v1611 = vadd.f32 %v1603, %v1608
    %v1612 = vsel %vm248, %v1610, 0.0
    %v1613 = vrot.slane %v1612, 4
    %v1614 = vadd.f32 %v1612, %v1613
    %v1615 = vrot.slane %v1614, 2
    %v1616 = vadd.f32 %v1614, %v1615
    %v1617 = vrot.slane %v1616, 1
    %v1618 = vadd.f32 %v1616, %v1617
    %v1619 = vsel %vm248, %v1611, 0.0
    %v1620 = vrot.slane %v1619, 4
    %v1621 = vadd.f32 %v1619, %v1620
    %v1622 = vrot.slane %v1621, 2
    %v1623 = vadd.f32 %v1621, %v1622
    %v1624 = vrot.slane %v1623, 1
    %v1625 = vadd.f32 %v1623, %v1624
    %v1626 = vrcp.pop 8.0
    %v1627 = vmul.f32 %v1618, %v1626
    %v1628 = vmul.f32 %v1625, %v1626
    %v1629 = vld [vmem:[%s17] sm:$0xff]
    %v1630 = vld [vmem:[%s17 + $0x8] sm:$0xff]
    %v1631 = vld [vmem:[%s17 + $0x10] sm:$0xff]
    %v1632 = vld [vmem:[%s17 + $0x18] sm:$0xff]
    %v1633 = vld [vmem:[%s18] sm:$0x1]
    %v1635 = vlaneseq
    %v1636 = vshrl.u32 %v1635, 7
    %v1637 = vsub.s32 0, %v1636
    %v1638 = vrot.slane %v1633, %v1637
    %vm1642 = vcmask 1041409
    %v1643 = vsel %vm1642, %v1628, %v1627
    %v1644 = vsel %vm248, %v1643, 0
    %1646 = vmatprep.subr.mxu0 0.0
    %1647 = vmatpush1.msra.mxu0 0.0
    %1648 = vmatprep.subr.mxu0 0.0
    %1649 = vmatpush1.msra.mxu0 0.0
    %1650 = vmatprep.subr.mxu0 0.0
    %1651 = vmatpush1.msra.mxu0 0.0
    %1652 = vmatprep.subr.mxu0 0.0
    %1653 = vmatpush1.msra.mxu0 0.0
    %1654 = vmatprep.subr.mxu0 0.0
    %1655 = vmatpush1.msra.mxu0 0.0
    %1656 = vmatprep.subr.mxu0 0.0
    %1657 = vmatpush1.msra.mxu0 0.0
    %1658 = vmatprep.subr.mxu0 0.0
    %1659 = vmatpush1.msra.mxu0 0.0
    %1660 = vmatprep.subr.mxu0 0.0
    %1661 = vmatpush1.msra.mxu0 0.0
    %1662 = vmatprep.subr.mxu0 0.0
    %1663 = vmatpush1.msra.mxu0 0.0
    %1664 = vmatprep.subr.mxu0 0.0
    %1665 = vmatpush1.msra.mxu0 0.0
    %1666 = vmatprep.subr.mxu0 0.0
    %1667 = vmatpush1.msra.mxu0 0.0
    %1668 = vmatprep.subr.mxu0 0.0
    %1669 = vmatpush1.msra.mxu0 0.0
    %1670 = vmatprep.subr.mxu0 0.0
    %1671 = vmatpush1.msra.mxu0 %v1632
    %1672 = vmatprep.subr.mxu0 0.0
    %1673 = vmatpush1.msra.mxu0 %v1631
    %1674 = vmatprep.subr.mxu0 0.0
    %1675 = vmatpush1.msra.mxu0 %v1630
    %1676 = vmatprep.subr.mxu0 0.0
    %1677 = vmatpush1.msra.mxu0 %v1629
    %1678 = vmatprep.subr.mxu0 0.0
    %1679 = vmatpush2.msra.mxu0 0.0
    %1680 = vmatprep.subr.mxu0 0.0
    %1681 = vmatpush2.msra.mxu0 0.0
    %1682 = vmatprep.subr.mxu0 0.0
    %1683 = vmatpush2.msra.mxu0 0.0
    %1684 = vmatprep.subr.mxu0 0.0
    %1685 = vmatpush2.msra.mxu0 0.0
    %1686 = vmatprep.subr.mxu0 0.0
    %1687 = vmatpush2.msra.mxu0 0.0
    %1688 = vmatprep.subr.mxu0 0.0
    %1689 = vmatpush2.msra.mxu0 0.0
    %1690 = vmatprep.subr.mxu0 0.0
    %1691 = vmatpush2.msra.mxu0 0.0
    %1692 = vmatprep.subr.mxu0 0.0
    %1693 = vmatpush2.msra.mxu0 0.0
    %1694 = vmatprep.subr.mxu0 0.0
    %1695 = vmatpush2.msra.mxu0 0.0
    %1696 = vmatprep.subr.mxu0 0.0
    %1697 = vmatpush2.msra.mxu0 0.0
    %1698 = vmatprep.subr.mxu0 0.0
    %1699 = vmatpush2.msra.mxu0 0.0
    %1700 = vmatprep.subr.mxu0 0.0
    %1701 = vmatpush2.msra.mxu0 0.0
    %1702 = vmatprep.subr.mxu0 0.0
    %1703 = vmatpush2.msra.mxu0 0.0
    %1704 = vmatprep.subr.mxu0 0.0
    %1705 = vmatpush2.msra.mxu0 0.0
    %1706 = vmatprep.subr.mxu0 0.0
    %1707 = vmatpush2.msra.mxu0 0.0
    %1708 = vmatprep.subr.mxu0 0.0
    %1709 = vmatpush2.msra.mxu0 0.0
    %1710 = vmatprep.mubr.f32.mxu0 0.0
    %1711 = vmatmul.mubr.f32.gmra.mxu0 %v1644
    %v1712 = vpop.f32.mrf.mxu0
    %v1713 = vadd.f32 %v1638, %v1712
    %v1714 = vpop.f32.mrf.mxu0
    %1715 = vdwg.mxu0
    %v1718 = vunpack.c.l.s4 1966171168
    %v1719 = vunpack.c.0.s8 %v1718
    %v1720 = vlaneseq
    %v1721 = vshrl.u32 %v1720, 7
    %v1722 = vsub.s32 %v1719, %v1721
    %v1723 = vrot.slane %v1713, %v1722
    %v1724 = vcombine.high %v1723, %v1723
    %v1726 = vunpack.c.l.s4 1966171168
    %v1727 = vunpack.c.0.s8 %v1726
    %v1728 = vlaneseq
    %v1729 = vshrl.u32 %v1728, 7
    %v1730 = vsub.s32 %v1727, %v1729
    %v1731 = vrot.slane %v1723, %v1730
    %v1733 = vunpack.c.l.s4 1966171168
    %v1734 = vunpack.c.0.s8 %v1733
    %v1735 = vlaneseq
    %v1736 = vshrl.u32 %v1735, 7
    %v1737 = vsub.s32 %v1734, %v1736
    %v1738 = vrot.slane %v1724, %v1737
    %1741 = vst [vmem:[#allocation23] sm:$0x1] %v1731
    %1742 = vst [vmem:[#allocation23 + $0x1] sm:$0x1] %v1738
    // Predicated region
    $region130: #{tpu_custom_call.1} parent=1 // pred_check
      _
    $region131: #{tpu_custom_call.1} parent=1 // pred_check_branch
      %1744 = sbr.rel (0) target = $region133
    $region132: #{tpu_custom_call.1} parent=1 // pred_region
      %s1746 = ssub.s32 32, 32
      %1747 = vsyncadd [#allocation4], %s1746
      %s1748 = sshll.u32 [#allocation23], 4
      %s1749 = int_to_ptr.vmem [resolvable:$true] %s1748
      %1754 = dma.vmem_to_hbm [thread:$0]  %s1749, 32, %s19, [#allocation4], 16, 16, 1
    $region133: #{tpu_custom_call.1} parent=1 // pred_fallthru
      _
    // Predicated region
    $region134: #{tpu_custom_call.1} parent=1 // pred_check
      _
    $region135: #{tpu_custom_call.1} parent=1 // pred_check_branch
      %1756 = sbr.rel (0) target = $region137
    $region136: #{tpu_custom_call.1} parent=1 // pred_region
      %1757 = dma.done [#allocation4], 32
    $region137: #{tpu_custom_call.1} parent=1 // pred_fallthru
      _
    %1758 = vsyncpa [#allocation3], 1
    %1759 = vsyncpa [#allocation6], 1
    %1760 = vsyncpa [#allocation9], 1
    %1761 = vsyncpa [#allocation12], 1
    %1762 = vsyncpa [#allocation15], 1
    %1763 = vsyncpa [#allocation18], 1
    %1764 = vsyncpa [#allocation21], 1
    %1765 = vsyncpa [#allocation4], 1

</llo_original>
